<compile_context>
chip_gen: v7x
topology: tpu7x:2x2x1
jax: 0.10.0
libtpu: 0.0.40
codegen_flags: <defaults>
</compile_context>

<pallas_src>
import numpy as np
import jax
import jax.numpy as jnp
from jax.experimental import pallas as pl
from jax.experimental.pallas import tpu as pltpu


def _round_up(a, b):
    return (a + b - 1) // b * b


# ----------------------------- Pallas kernel ------------------------------
def _kernel_body(scal_ref, x_ref, sphere_ref, w1t1_ref, w1t2_ref, b1_ref,
                 w2_ref, out_ref, *, type1, type2, fold_atom1):
    # scal_ref:   (3,) SMEM f32 = [1/a0, 0.5/a0, b2]
    # x_ref:      (7, TN)  rows = [theta, vx, vy, vz, dx, dy, dz]
    # sphere_ref: (S, 3)
    # w1t1_ref:   (H, S)   W1[:S,:]^T   (only when not fold_atom1)
    # w1t2_ref:   (H, S)   W1[S:,:]^T
    # b1_ref:     (H, 1)   (already contains the atom-1 fold when fold_atom1)
    # w2_ref:     (H, 1)
    # out_ref:    (1, TN)
    inv_a0 = scal_ref[0]
    half_inv_a0 = scal_ref[1]
    b2 = scal_ref[2]

    theta = x_ref[0:1, :]          # (1, TN)
    vx = x_ref[1:2, :]
    vy = x_ref[2:3, :]
    vz = x_ref[3:4, :]
    ox = x_ref[4:5, :]
    oy = x_ref[5:6, :]
    oz = x_ref[6:7, :]

    c = jnp.cos(theta)
    s = jnp.sin(theta)
    oc = 1.0 - c

    # Rodrigues rotation matrix entries, each (1, TN)
    r00 = c + oc * vx * vx
    r01 = oc * vx * vy - vz * s
    r02 = oc * vx * vz + vy * s
    r10 = oc * vx * vy + vz * s
    r11 = c + oc * vy * vy
    r12 = oc * vy * vz - vx * s
    r20 = oc * vx * vz - vy * s
    r21 = oc * vy * vz + vx * s
    r22 = c + oc * vz * vz

    sx = sphere_ref[:, 0:1]        # (S, 1)
    sy = sphere_ref[:, 1:2]
    sz = sphere_ref[:, 2:3]

    # Single (S, TN) rotation of the sphere -- shared by atom 1 and atom 2
    # (atom 2 uses R(s+o) = R·s + R·o).
    rx = r00 * sx + r01 * sy + r02 * sz
    ry = r10 * sx + r11 * sy + r12 * sz
    rz = r20 * sx + r21 * sy + r22 * sz

    def l2norm(wf):
        # torch.nn.functional.normalize(wf, 2, dim=sphere-axis), eps=1e-12:
        #   wf / max(||wf||, 1e-12)  ==  wf * rsqrt(max(sumsq, 1e-24))
        ss = jnp.sum(wf * wf, axis=0, keepdims=True)
        return wf * jax.lax.rsqrt(jnp.maximum(ss, 1e-24))

    def orbital(px, py, pz, typ):
        r = jnp.sqrt(px * px + py * py + pz * pz)
        e = jnp.exp(-(r * half_inv_a0))
        wf_s = l2norm((2.0 - r * inv_a0) * e)
        if typ in ("1s", "2s"):
            return wf_s
        e_div_a0 = e * inv_a0
        wf_px = l2norm(px * e_div_a0)
        wf_py = l2norm(py * e_div_a0)
        wf_pz = l2norm(pz * e_div_a0)
        if typ == "sp30":
            return (wf_s + wf_px + wf_py + wf_pz) * 0.5
        if typ == "sp31":
            return (wf_s + wf_px - wf_py - wf_pz) * 0.5
        if typ == "sp32":
            return (wf_s - wf_px + wf_py - wf_pz) * 0.5
        if typ == "sp33":
            return (wf_s - wf_px - wf_py + wf_pz) * 0.5
        raise ValueError(f"unknown orbital type: {typ}")

    if fold_atom1:
        # atom-1 wavefunction is rotation-invariant; W1[:S]^T @ wf1 already
        # folded into b1 by the wrapper.
        h_partial = b1_ref[...]                                   # (H, 1)
    else:
        wf1 = orbital(rx, ry, rz, type1)                          # (S, TN)
        # issue the atom-1 matmul now so wf1's vregs die before atom-2 work
        h_partial = jnp.dot(w1t1_ref[...], wf1,
                            preferred_element_type=jnp.float32) + b1_ref[...]

    # atom 2: rotate the per-molecule offset on a single sublane and add it
    rox = r00 * ox + r01 * oy + r02 * oz                          # (1, TN)
    roy = r10 * ox + r11 * oy + r12 * oz
    roz = r20 * ox + r21 * oy + r22 * oz

    wf2 = orbital(rx + rox, ry + roy, rz + roz, type2)            # (S, TN)

    h = jnp.dot(w1t2_ref[...], wf2,
                preferred_element_type=jnp.float32) + h_partial   # (H, TN)
    h = jnp.maximum(h, 0.0)                                       # ReLU
    # (H,1)-weighted sublane reduce instead of an M=1 MXU matmul
    out_ref[...] = jnp.sum(h * w2_ref[...], axis=0, keepdims=True) + b2


def _make_kernel(type1, type2, fold_atom1):
    if fold_atom1:
        def kernel(scal_ref, x_ref, sphere_ref, w1t2_ref, b1_ref, w2_ref,
                   out_ref):
            _kernel_body(scal_ref, x_ref, sphere_ref, None, w1t2_ref, b1_ref,
                         w2_ref, out_ref, type1=type1, type2=type2,
                         fold_atom1=True)
    else:
        def kernel(scal_ref, x_ref, sphere_ref, w1t1_ref, w1t2_ref, b1_ref,
                   w2_ref, out_ref):
            _kernel_body(scal_ref, x_ref, sphere_ref, w1t1_ref, w1t2_ref,
                         b1_ref, w2_ref, out_ref, type1=type1, type2=type2,
                         fold_atom1=False)
    return kernel


# ------------------------------- wrapper ----------------------------------
def orbital_potential_forward(x, sphere, a0, w1, b1, w2, b2, *,
                              type1="2s", type2="sp31", tn=128,
                              assume_unit_axis=True):
    """x: (1, N, 7) f32, sphere: (S, 3) f32. Returns energies (N, 1) f32."""
    B, N, F = x.shape
    assert B == 1 and F == 7
    if N == 0:
        return jnp.zeros((B, 0, 1), jnp.float32)

    S = sphere.shape[0]
    H = w1.shape[1]

    # tile size: multiple of 128 (lane width); small tiles minimize padding
    # waste and vreg pressure (kernel is compute-bound, DMA is negligible).
    tn_eff = max(128, min(int(tn), _round_up(N, 128)))
    tn_eff = _round_up(tn_eff, 128)
    n_pad = _round_up(N, tn_eff)

    # pad molecules to the tile and put them on the lane axis: (7, n_pad).
    # Padded rows are zeros -> identity rotation, finite wavefunctions,
    # results dropped on the slice at the end.
    xn = x[0].astype(jnp.float32)                            # (N, 7)
    x_pad = jnp.zeros((n_pad, 7), jnp.float32).at[:N].set(xn)
    xt = x_pad.T                                             # (7, n_pad)

    sphere_f = sphere.astype(jnp.float32)                    # (S, 3)
    a0f = jnp.asarray(a0, jnp.float32).reshape(())
    inv_a0 = 1.0 / a0f
    half_inv_a0 = 0.5 * inv_a0

    w1f = w1.astype(jnp.float32)                             # (2S, H)
    b1f = b1.astype(jnp.float32).reshape(-1)                 # (H,)
    w2_2d = w2.astype(jnp.float32).reshape(-1, 1)            # (H, 1)
    b2f = jnp.asarray(b2, jnp.float32).reshape(())

    w1t1 = w1f[:S, :].T                                      # (H, S)
    w1t2 = w1f[S:, :].T                                      # (H, S)

    # atom-1 fold: for s-type orbitals with a unit rotation axis, wf1 is a
    # fixed (S,) vector independent of the molecule -> fold into b1.
    fold_atom1 = bool(assume_unit_axis) and (type1 in ("1s", "2s"))
    if fold_atom1:
        r1 = jnp.sqrt(jnp.sum(sphere_f * sphere_f, axis=1))  # (S,)
        e1 = jnp.exp(-r1 * half_inv_a0)
        wf1 = (2.0 - r1 * inv_a0) * e1
        wf1 = wf1 / jnp.maximum(jnp.sqrt(jnp.sum(wf1 * wf1)), 1e-12)
        b1_eff = b1f + w1t1 @ wf1                            # (H,)
    else:
        b1_eff = b1f
    b1_2d = b1_eff.reshape(-1, 1)                            # (H, 1)

    # scalars for SMEM: [1/a0, 0.5/a0, b2]
    scalars = jnp.stack([inv_a0, half_inv_a0, b2f]).astype(jnp.float32)

    kernel = _make_kernel(type1, type2, fold_atom1)
    grid = (n_pad // tn_eff,)

    in_arrays = [scalars, xt, sphere_f]
    in_specs = [
        pl.BlockSpec(memory_space=pltpu.MemorySpace.SMEM),   # scalars
        pl.BlockSpec((7, tn_eff), lambda i: (0, i)),         # x^T tile
        pl.BlockSpec((S, 3), lambda i: (0, 0)),              # sphere
    ]
    if not fold_atom1:
        in_arrays.append(w1t1)
        in_specs.append(pl.BlockSpec((H, S), lambda i: (0, 0)))   # W1[:S]^T
    in_arrays += [w1t2, b1_2d, w2_2d]
    in_specs += [
        pl.BlockSpec((H, S), lambda i: (0, 0)),              # W1[S:]^T
        pl.BlockSpec((H, 1), lambda i: (0, 0)),              # b1 (folded)
        pl.BlockSpec((H, 1), lambda i: (0, 0)),              # W2 (column)
    ]

    out = pl.pallas_call(
        kernel,
        out_shape=jax.ShapeDtypeStruct((1, n_pad), jnp.float32),
        grid_spec=pltpu.PrefetchScalarGridSpec(
            num_scalar_prefetch=0,
            grid=grid,
            in_specs=in_specs,
            out_specs=pl.BlockSpec((1, tn_eff), lambda i: (0, i)),
        ),
        compiler_params=pltpu.CompilerParams(
            dimension_semantics=("parallel",)),
    )(*in_arrays)

    return out[0, :N].reshape(N, 1)


# ---------------------------- pure-JAX reference ---------------------------
def reference_forward(x, sphere, a0, w1, b1, w2, b2, type1, type2):
    xn = x[0]
    theta, vx, vy, vz = xn[:, 0], xn[:, 1], xn[:, 2], xn[:, 3]
    off = xn[:, 4:7]
    c, s = jnp.cos(theta), jnp.sin(theta)
    oc = 1.0 - c
    R = jnp.stack([
        jnp.stack([c + oc * vx * vx, oc * vx * vy - vz * s, oc * vx * vz + vy * s], -1),
        jnp.stack([oc * vx * vy + vz * s, c + oc * vy * vy, oc * vy * vz - vx * s], -1),
        jnp.stack([oc * vx * vz - vy * s, oc * vy * vz + vx * s, c + oc * vz * vz], -1),
    ], axis=1)                                                   # (N, 3, 3)

    a0s = jnp.asarray(a0).reshape(())

    def l2norm(wf):
        n = jnp.sqrt(jnp.sum(wf * wf, axis=1, keepdims=True))
        return wf / jnp.maximum(n, 1e-12)

    def orbital(pos, typ):
        r = jnp.sqrt(jnp.sum(pos * pos, axis=-1))
        e = jnp.exp(-r / a0s * 0.5)
        wf_s = l2norm((2.0 - r / a0s) * e)
        if typ in ("1s", "2s"):
            return wf_s
        wf_px = l2norm(pos[..., 0] / a0s * e)
        wf_py = l2norm(pos[..., 1] / a0s * e)
        wf_pz = l2norm(pos[..., 2] / a0s * e)
        return {"sp30": (wf_s + wf_px + wf_py + wf_pz),
                "sp31": (wf_s + wf_px - wf_py - wf_pz),
                "sp32": (wf_s - wf_px + wf_py - wf_pz),
                "sp33": (wf_s - wf_px - wf_py + wf_pz)}[typ] * 0.5

    atom1 = jnp.einsum("njk,sk->nsj", R, sphere)                 # 'ijk,imk->imj'
    atom2 = jnp.einsum("njk,nsk->nsj", R, sphere[None] + off[:, None, :])
    wf1 = orbital(atom1, type1)
    wf2 = orbital(atom2, type2)
    g = jnp.concatenate([wf1, wf2], axis=1)                      # (N, 2S)
    h = jnp.maximum(g @ w1 + b1, 0.0)
    return h @ w2 + b2                                           # (N, 1)


# --------------------------------- main ------------------------------------
if __name__ == "__main__":
    N, S, H = 300, 64, 20         # molecules, sphere grid points, hidden dim

    key = jax.random.PRNGKey(0)
    k_sph, k_th, k_ax, k_off, k_w1, k_b1, k_w2, k_b2 = jax.random.split(key, 8)

    # deterministic unit sphere grid
    sph = jax.random.normal(k_sph, (S, 3), jnp.float32)
    sphere = sph / jnp.linalg.norm(sph, axis=1, keepdims=True)

    # input x: (1, N, 7) = [theta, unit rotation axis (3), atom-2 offset (3)]
    theta = jax.random.uniform(k_th, (N, 1), jnp.float32, 0.0, 2.0 * np.pi)
    axis = jax.random.normal(k_ax, (N, 3), jnp.float32)
    axis = axis / jnp.linalg.norm(axis, axis=1, keepdims=True)
    offset = 1.5 * jax.random.normal(k_off, (N, 3), jnp.float32)
    x = jnp.concatenate([theta, axis, offset], axis=1)[None]     # (1, N, 7)

    # parameters (deterministic, PyTorch-style uniform init)
    a0 = jnp.array([6.7], jnp.float32)
    k1 = 1.0 / np.sqrt(2 * S)
    w1 = jax.random.uniform(k_w1, (2 * S, H), jnp.float32, -k1, k1)
    b1 = jax.random.uniform(k_b1, (H,), jnp.float32, -k1, k1)
    k2 = 1.0 / np.sqrt(H)
    w2 = jax.random.uniform(k_w2, (H, 1), jnp.float32, -k2, k2)
    b2 = jax.random.uniform(k_b2, (1,), jnp.float32, -k2, k2)

    # fast path: type1 is s-type -> atom-1 folded into b1
    energy = orbital_potential_forward(x, sphere, a0, w1, b1, w2, b2,
                                       type1="2s", type2="sp31")
    energy = jax.block_until_ready(energy)
    ref = jax.block_until_ready(
        reference_forward(x, sphere, a0, w1, b1, w2, b2, "2s", "sp31"))
    assert energy.shape == (N, 1)
    np.testing.assert_allclose(np.asarray(energy), np.asarray(ref),
                               rtol=1e-3, atol=1e-3)

    # general path: sp3 atom-1 computed in-kernel (shared rotate + split matmul)
    energy2 = orbital_potential_forward(x, sphere, a0, w1, b1, w2, b2,
                                        type1="sp32", type2="sp33")
    energy2 = jax.block_until_ready(energy2)
    ref2 = jax.block_until_ready(
        reference_forward(x, sphere, a0, w1, b1, w2, b2, "sp32", "sp33"))
    np.testing.assert_allclose(np.asarray(energy2), np.asarray(ref2),
                               rtol=1e-3, atol=1e-3)

    print("KERNEL_OK")
</pallas_src>

<mosaic_0001>
module attributes {stable_mosaic.version = 11 : i64} {
  func.func @kernel(%arg0: i32, %arg1: memref<3xf32, #tpu.memory_space<smem>>, %arg2: memref<7x128xf32, #tpu.memory_space<vmem>>, %arg3: memref<64x3xf32, #tpu.memory_space<vmem>>, %arg4: memref<20x64xf32, #tpu.memory_space<vmem>>, %arg5: memref<20x1xf32, #tpu.memory_space<vmem>>, %arg6: memref<20x1xf32, #tpu.memory_space<vmem>>, %arg7: memref<1x128xf32, #tpu.memory_space<vmem>>) attributes {dimension_semantics = [#tpu.dimension_semantics<parallel>], iteration_bounds = array<i64: 3>, scalar_prefetch = 0 : i64, scratch_operands = 0 : i64, tpu.core_type = #tpu.core_type<tc>, window_params = [{transform_indices = @transform_0, window_bounds = array<i64: 3>}, {transform_indices = @transform_1, window_bounds = array<i64: 7, 128>}, {pipeline_mode = #tpu.pipeline_mode<synchronous>, transform_indices = @transform_2, window_bounds = array<i64: 64, 3>}, {pipeline_mode = #tpu.pipeline_mode<synchronous>, transform_indices = @transform_3, window_bounds = array<i64: 20, 64>}, {pipeline_mode = #tpu.pipeline_mode<synchronous>, transform_indices = @transform_4, window_bounds = array<i64: 20, 1>}, {pipeline_mode = #tpu.pipeline_mode<synchronous>, transform_indices = @transform_5, window_bounds = array<i64: 20, 1>}, {transform_indices = @transform_6, window_bounds = array<i64: 1, 128>}]} {
    %c0 = arith.constant 0 : index
    %0 = memref.load %arg1[%c0] : memref<3xf32, #tpu.memory_space<smem>>
    %c1 = arith.constant 1 : index
    %1 = memref.load %arg1[%c1] : memref<3xf32, #tpu.memory_space<smem>>
    %c2 = arith.constant 2 : index
    %2 = memref.load %arg1[%c2] : memref<3xf32, #tpu.memory_space<smem>>
    %c0_0 = arith.constant 0 : index
    %c0_1 = arith.constant 0 : index
    %3 = vector.load %arg2[%c0_0, %c0_1] : memref<7x128xf32, #tpu.memory_space<vmem>>, vector<1x128xf32>
    %c1_2 = arith.constant 1 : index
    %c0_3 = arith.constant 0 : index
    %4 = vector.load %arg2[%c1_2, %c0_3] : memref<7x128xf32, #tpu.memory_space<vmem>>, vector<1x128xf32>
    %c2_4 = arith.constant 2 : index
    %c0_5 = arith.constant 0 : index
    %5 = vector.load %arg2[%c2_4, %c0_5] : memref<7x128xf32, #tpu.memory_space<vmem>>, vector<1x128xf32>
    %c3 = arith.constant 3 : index
    %c0_6 = arith.constant 0 : index
    %6 = vector.load %arg2[%c3, %c0_6] : memref<7x128xf32, #tpu.memory_space<vmem>>, vector<1x128xf32>
    %c4 = arith.constant 4 : index
    %c0_7 = arith.constant 0 : index
    %7 = vector.load %arg2[%c4, %c0_7] : memref<7x128xf32, #tpu.memory_space<vmem>>, vector<1x128xf32>
    %c5 = arith.constant 5 : index
    %c0_8 = arith.constant 0 : index
    %8 = vector.load %arg2[%c5, %c0_8] : memref<7x128xf32, #tpu.memory_space<vmem>>, vector<1x128xf32>
    %c6 = arith.constant 6 : index
    %c0_9 = arith.constant 0 : index
    %9 = vector.load %arg2[%c6, %c0_9] : memref<7x128xf32, #tpu.memory_space<vmem>>, vector<1x128xf32>
    %10 = math.cos %3 : vector<1x128xf32>
    %11 = math.sin %3 : vector<1x128xf32>
    %cst = arith.constant 1.000000e+00 : f32
    %12 = vector.broadcast %cst : f32 to vector<1x128xf32>
    %13 = arith.subf %12, %10 : vector<1x128xf32>
    %14 = arith.mulf %13, %4 : vector<1x128xf32>
    %15 = arith.mulf %14, %4 : vector<1x128xf32>
    %16 = arith.addf %10, %15 : vector<1x128xf32>
    %17 = arith.mulf %13, %4 : vector<1x128xf32>
    %18 = arith.mulf %17, %5 : vector<1x128xf32>
    %19 = arith.mulf %6, %11 : vector<1x128xf32>
    %20 = arith.subf %18, %19 : vector<1x128xf32>
    %21 = arith.mulf %13, %4 : vector<1x128xf32>
    %22 = arith.mulf %21, %6 : vector<1x128xf32>
    %23 = arith.mulf %5, %11 : vector<1x128xf32>
    %24 = arith.addf %22, %23 : vector<1x128xf32>
    %25 = arith.mulf %13, %4 : vector<1x128xf32>
    %26 = arith.mulf %25, %5 : vector<1x128xf32>
    %27 = arith.mulf %6, %11 : vector<1x128xf32>
    %28 = arith.addf %26, %27 : vector<1x128xf32>
    %29 = arith.mulf %13, %5 : vector<1x128xf32>
    %30 = arith.mulf %29, %5 : vector<1x128xf32>
    %31 = arith.addf %10, %30 : vector<1x128xf32>
    %32 = arith.mulf %13, %5 : vector<1x128xf32>
    %33 = arith.mulf %32, %6 : vector<1x128xf32>
    %34 = arith.mulf %4, %11 : vector<1x128xf32>
    %35 = arith.subf %33, %34 : vector<1x128xf32>
    %36 = arith.mulf %13, %4 : vector<1x128xf32>
    %37 = arith.mulf %36, %6 : vector<1x128xf32>
    %38 = arith.mulf %5, %11 : vector<1x128xf32>
    %39 = arith.subf %37, %38 : vector<1x128xf32>
    %40 = arith.mulf %13, %5 : vector<1x128xf32>
    %41 = arith.mulf %40, %6 : vector<1x128xf32>
    %42 = arith.mulf %4, %11 : vector<1x128xf32>
    %43 = arith.addf %41, %42 : vector<1x128xf32>
    %44 = arith.mulf %13, %6 : vector<1x128xf32>
    %45 = arith.mulf %44, %6 : vector<1x128xf32>
    %46 = arith.addf %10, %45 : vector<1x128xf32>
    %c0_10 = arith.constant 0 : index
    %c0_11 = arith.constant 0 : index
    %47 = vector.load %arg3[%c0_10, %c0_11] : memref<64x3xf32, #tpu.memory_space<vmem>>, vector<64x1xf32>
    %c0_12 = arith.constant 0 : index
    %c1_13 = arith.constant 1 : index
    %48 = vector.load %arg3[%c0_12, %c1_13] : memref<64x3xf32, #tpu.memory_space<vmem>>, vector<64x1xf32>
    %c0_14 = arith.constant 0 : index
    %c2_15 = arith.constant 2 : index
    %49 = vector.load %arg3[%c0_14, %c2_15] : memref<64x3xf32, #tpu.memory_space<vmem>>, vector<64x1xf32>
    %50 = vector.broadcast %16 : vector<1x128xf32> to vector<64x128xf32>
    %51 = vector.broadcast %47 : vector<64x1xf32> to vector<64x128xf32>
    %52 = arith.mulf %50, %51 : vector<64x128xf32>
    %53 = vector.broadcast %20 : vector<1x128xf32> to vector<64x128xf32>
    %54 = vector.broadcast %48 : vector<64x1xf32> to vector<64x128xf32>
    %55 = arith.mulf %53, %54 : vector<64x128xf32>
    %56 = arith.addf %52, %55 : vector<64x128xf32>
    %57 = vector.broadcast %24 : vector<1x128xf32> to vector<64x128xf32>
    %58 = vector.broadcast %49 : vector<64x1xf32> to vector<64x128xf32>
    %59 = arith.mulf %57, %58 : vector<64x128xf32>
    %60 = arith.addf %56, %59 : vector<64x128xf32>
    %61 = vector.broadcast %28 : vector<1x128xf32> to vector<64x128xf32>
    %62 = vector.broadcast %47 : vector<64x1xf32> to vector<64x128xf32>
    %63 = arith.mulf %61, %62 : vector<64x128xf32>
    %64 = vector.broadcast %31 : vector<1x128xf32> to vector<64x128xf32>
    %65 = vector.broadcast %48 : vector<64x1xf32> to vector<64x128xf32>
    %66 = arith.mulf %64, %65 : vector<64x128xf32>
    %67 = arith.addf %63, %66 : vector<64x128xf32>
    %68 = vector.broadcast %35 : vector<1x128xf32> to vector<64x128xf32>
    %69 = vector.broadcast %49 : vector<64x1xf32> to vector<64x128xf32>
    %70 = arith.mulf %68, %69 : vector<64x128xf32>
    %71 = arith.addf %67, %70 : vector<64x128xf32>
    %72 = vector.broadcast %39 : vector<1x128xf32> to vector<64x128xf32>
    %73 = vector.broadcast %47 : vector<64x1xf32> to vector<64x128xf32>
    %74 = arith.mulf %72, %73 : vector<64x128xf32>
    %75 = vector.broadcast %43 : vector<1x128xf32> to vector<64x128xf32>
    %76 = vector.broadcast %48 : vector<64x1xf32> to vector<64x128xf32>
    %77 = arith.mulf %75, %76 : vector<64x128xf32>
    %78 = arith.addf %74, %77 : vector<64x128xf32>
    %79 = vector.broadcast %46 : vector<1x128xf32> to vector<64x128xf32>
    %80 = vector.broadcast %49 : vector<64x1xf32> to vector<64x128xf32>
    %81 = arith.mulf %79, %80 : vector<64x128xf32>
    %82 = arith.addf %78, %81 : vector<64x128xf32>
    %c0_16 = arith.constant 0 : index
    %c0_17 = arith.constant 0 : index
    %83 = vector.load %arg5[%c0_16, %c0_17] : memref<20x1xf32, #tpu.memory_space<vmem>>, vector<20x1xf32>
    %84 = arith.mulf %16, %7 : vector<1x128xf32>
    %85 = arith.mulf %20, %8 : vector<1x128xf32>
    %86 = arith.addf %84, %85 : vector<1x128xf32>
    %87 = arith.mulf %24, %9 : vector<1x128xf32>
    %88 = arith.addf %86, %87 : vector<1x128xf32>
    %89 = arith.mulf %28, %7 : vector<1x128xf32>
    %90 = arith.mulf %31, %8 : vector<1x128xf32>
    %91 = arith.addf %89, %90 : vector<1x128xf32>
    %92 = arith.mulf %35, %9 : vector<1x128xf32>
    %93 = arith.addf %91, %92 : vector<1x128xf32>
    %94 = arith.mulf %39, %7 : vector<1x128xf32>
    %95 = arith.mulf %43, %8 : vector<1x128xf32>
    %96 = arith.addf %94, %95 : vector<1x128xf32>
    %97 = arith.mulf %46, %9 : vector<1x128xf32>
    %98 = arith.addf %96, %97 : vector<1x128xf32>
    %99 = vector.broadcast %88 : vector<1x128xf32> to vector<64x128xf32>
    %100 = arith.addf %60, %99 : vector<64x128xf32>
    %101 = vector.broadcast %93 : vector<1x128xf32> to vector<64x128xf32>
    %102 = arith.addf %71, %101 : vector<64x128xf32>
    %103 = vector.broadcast %98 : vector<1x128xf32> to vector<64x128xf32>
    %104 = arith.addf %82, %103 : vector<64x128xf32>
    %105 = arith.mulf %100, %100 : vector<64x128xf32>
    %106 = arith.mulf %102, %102 : vector<64x128xf32>
    %107 = arith.addf %105, %106 : vector<64x128xf32>
    %108 = arith.mulf %104, %104 : vector<64x128xf32>
    %109 = arith.addf %107, %108 : vector<64x128xf32>
    %110 = math.sqrt %109 : vector<64x128xf32>
    %111 = vector.broadcast %1 : f32 to vector<64x128xf32>
    %112 = arith.mulf %110, %111 : vector<64x128xf32>
    %cst_18 = arith.constant 0.000000e+00 : f32
    %113 = vector.broadcast %cst_18 : f32 to vector<64x128xf32>
    %114 = arith.subf %113, %112 : vector<64x128xf32>
    %115 = math.exp %114 : vector<64x128xf32>
    %116 = vector.broadcast %0 : f32 to vector<64x128xf32>
    %117 = arith.mulf %110, %116 : vector<64x128xf32>
    %cst_19 = arith.constant 2.000000e+00 : f32
    %118 = vector.broadcast %cst_19 : f32 to vector<64x128xf32>
    %119 = arith.subf %118, %117 : vector<64x128xf32>
    %120 = arith.mulf %119, %115 : vector<64x128xf32>
    %121 = arith.mulf %120, %120 : vector<64x128xf32>
    %cst_20 = arith.constant dense<0.000000e+00> : vector<128xf32>
    %122 = vector.multi_reduction <add>, %121, %cst_20 [0] : vector<64x128xf32> to vector<128xf32>
    %123 = vector.shape_cast %122 : vector<128xf32> to vector<1x128xf32>
    %cst_21 = arith.constant 1.000000e-24 : f32
    %124 = vector.broadcast %cst_21 : f32 to vector<1x128xf32>
    %125 = arith.maximumf %123, %124 : vector<1x128xf32>
    %126 = math.rsqrt %125 : vector<1x128xf32>
    %127 = vector.broadcast %126 : vector<1x128xf32> to vector<64x128xf32>
    %128 = arith.mulf %120, %127 : vector<64x128xf32>
    %129 = vector.broadcast %0 : f32 to vector<64x128xf32>
    %130 = arith.mulf %115, %129 : vector<64x128xf32>
    %131 = arith.mulf %100, %130 : vector<64x128xf32>
    %132 = arith.mulf %131, %131 : vector<64x128xf32>
    %cst_22 = arith.constant dense<0.000000e+00> : vector<128xf32>
    %133 = vector.multi_reduction <add>, %132, %cst_22 [0] : vector<64x128xf32> to vector<128xf32>
    %134 = vector.shape_cast %133 : vector<128xf32> to vector<1x128xf32>
    %cst_23 = arith.constant 1.000000e-24 : f32
    %135 = vector.broadcast %cst_23 : f32 to vector<1x128xf32>
    %136 = arith.maximumf %134, %135 : vector<1x128xf32>
    %137 = math.rsqrt %136 : vector<1x128xf32>
    %138 = vector.broadcast %137 : vector<1x128xf32> to vector<64x128xf32>
    %139 = arith.mulf %131, %138 : vector<64x128xf32>
    %140 = arith.mulf %102, %130 : vector<64x128xf32>
    %141 = arith.mulf %140, %140 : vector<64x128xf32>
    %cst_24 = arith.constant dense<0.000000e+00> : vector<128xf32>
    %142 = vector.multi_reduction <add>, %141, %cst_24 [0] : vector<64x128xf32> to vector<128xf32>
    %143 = vector.shape_cast %142 : vector<128xf32> to vector<1x128xf32>
    %cst_25 = arith.constant 1.000000e-24 : f32
    %144 = vector.broadcast %cst_25 : f32 to vector<1x128xf32>
    %145 = arith.maximumf %143, %144 : vector<1x128xf32>
    %146 = math.rsqrt %145 : vector<1x128xf32>
    %147 = vector.broadcast %146 : vector<1x128xf32> to vector<64x128xf32>
    %148 = arith.mulf %140, %147 : vector<64x128xf32>
    %149 = arith.mulf %104, %130 : vector<64x128xf32>
    %150 = arith.mulf %149, %149 : vector<64x128xf32>
    %cst_26 = arith.constant dense<0.000000e+00> : vector<128xf32>
    %151 = vector.multi_reduction <add>, %150, %cst_26 [0] : vector<64x128xf32> to vector<128xf32>
    %152 = vector.shape_cast %151 : vector<128xf32> to vector<1x128xf32>
    %cst_27 = arith.constant 1.000000e-24 : f32
    %153 = vector.broadcast %cst_27 : f32 to vector<1x128xf32>
    %154 = arith.maximumf %152, %153 : vector<1x128xf32>
    %155 = math.rsqrt %154 : vector<1x128xf32>
    %156 = vector.broadcast %155 : vector<1x128xf32> to vector<64x128xf32>
    %157 = arith.mulf %149, %156 : vector<64x128xf32>
    %158 = arith.addf %128, %139 : vector<64x128xf32>
    %159 = arith.subf %158, %148 : vector<64x128xf32>
    %160 = arith.subf %159, %157 : vector<64x128xf32>
    %cst_28 = arith.constant 5.000000e-01 : f32
    %161 = vector.broadcast %cst_28 : f32 to vector<64x128xf32>
    %162 = arith.mulf %160, %161 : vector<64x128xf32>
    %c0_29 = arith.constant 0 : index
    %c0_30 = arith.constant 0 : index
    %163 = vector.load %arg4[%c0_29, %c0_30] : memref<20x64xf32, #tpu.memory_space<vmem>>, vector<20x64xf32>
    %cst_31 = arith.constant dense<0.000000e+00> : vector<20x128xf32>
    %164 = tpu.matmul %163, %162, %cst_31 {dimension_numbers = #tpu.dot_dimension_numbers<[1], [0], [0], [1], [0, 0, 1, 1], [], []>} : vector<20x64xf32>, vector<64x128xf32>, vector<20x128xf32> -> vector<20x128xf32>
    %165 = vector.broadcast %83 : vector<20x1xf32> to vector<20x128xf32>
    %166 = arith.addf %164, %165 : vector<20x128xf32>
    %cst_32 = arith.constant 0.000000e+00 : f32
    %167 = vector.broadcast %cst_32 : f32 to vector<20x128xf32>
    %168 = arith.maximumf %166, %167 : vector<20x128xf32>
    %c0_33 = arith.constant 0 : index
    %c0_34 = arith.constant 0 : index
    %169 = vector.load %arg6[%c0_33, %c0_34] : memref<20x1xf32, #tpu.memory_space<vmem>>, vector<20x1xf32>
    %170 = vector.broadcast %169 : vector<20x1xf32> to vector<20x128xf32>
    %171 = arith.mulf %168, %170 : vector<20x128xf32>
    %cst_35 = arith.constant dense<0.000000e+00> : vector<128xf32>
    %172 = vector.multi_reduction <add>, %171, %cst_35 [0] : vector<20x128xf32> to vector<128xf32>
    %173 = vector.shape_cast %172 : vector<128xf32> to vector<1x128xf32>
    %174 = vector.broadcast %2 : f32 to vector<1x128xf32>
    %175 = arith.addf %173, %174 : vector<1x128xf32>
    %c0_36 = arith.constant 0 : index
    %c0_37 = arith.constant 0 : index
    %176 = vector.load %arg7[%c0_36, %c0_37] : memref<1x128xf32, #tpu.memory_space<vmem>>, vector<1x128xf32>
    tpu.vector_store %arg7[%c0_36, %c0_37], %175 {strides = array<i32>} : memref<1x128xf32, #tpu.memory_space<vmem>>, vector<1x128xf32>,
    return
  }
  func.func @transform_0(%arg0: i32) -> i32 {
    %c0_i32 = arith.constant 0 : i32
    %c0_i32_0 = arith.constant 0 : i32
    return %c0_i32 : i32
  }
  func.func @transform_1(%arg0: i32) -> (i32, i32) {
    %c0_i32 = arith.constant 0 : i32
    %c0_i32_0 = arith.constant 0 : i32
    return %c0_i32, %arg0 : i32, i32
  }
  func.func @transform_2(%arg0: i32) -> (i32, i32) {
    %c0_i32 = arith.constant 0 : i32
    %c0_i32_0 = arith.constant 0 : i32
    %c0_i32_1 = arith.constant 0 : i32
    return %c0_i32, %c0_i32_0 : i32, i32
  }
  func.func @transform_3(%arg0: i32) -> (i32, i32) {
    %c0_i32 = arith.constant 0 : i32
    %c0_i32_0 = arith.constant 0 : i32
    %c0_i32_1 = arith.constant 0 : i32
    return %c0_i32, %c0_i32_0 : i32, i32
  }
  func.func @transform_4(%arg0: i32) -> (i32, i32) {
    %c0_i32 = arith.constant 0 : i32
    %c0_i32_0 = arith.constant 0 : i32
    %c0_i32_1 = arith.constant 0 : i32
    return %c0_i32, %c0_i32_0 : i32, i32
  }
  func.func @transform_5(%arg0: i32) -> (i32, i32) {
    %c0_i32 = arith.constant 0 : i32
    %c0_i32_0 = arith.constant 0 : i32
    %c0_i32_1 = arith.constant 0 : i32
    return %c0_i32, %c0_i32_0 : i32, i32
  }
  func.func @transform_6(%arg0: i32) -> (i32, i32) {
    %c0_i32 = arith.constant 0 : i32
    %c0_i32_0 = arith.constant 0 : i32
    return %c0_i32, %arg0 : i32, i32
  }
}

</mosaic_0001>

<llo_original>
// kernel: tpu_custom_call.1
$region0: #{tpu_custom_call.1}
  #allocation0 [shape = 'u32[]', space=smem, size = 0x4, offset = 0x4, fixed_abs, tag = 'smem constant byte address 0x4 - core index']
  #allocation1 [shape = 'u32[144,128]{1,0:T(1,128)}', space=vmem, size = 0x12000, scoped, tag = 'internal scratch']
  %s0 = inlined_call_operand.vmem [shape: f32[3], index: 0, kind: input, shape index: {}]
  %s1 = inlined_call_operand.vmem [shape: f32[7,384], index: 1, kind: input, shape index: {}]
  %s2 = inlined_call_operand.vmem [shape: f32[64,3], index: 2, kind: input, shape index: {}]
  %s3 = inlined_call_operand.vmem [shape: f32[20,64], index: 3, kind: input, shape index: {}]
  %s4 = inlined_call_operand.vmem [shape: f32[20,1], index: 4, kind: input, shape index: {}]
  %s5 = inlined_call_operand.vmem [shape: f32[20,1], index: 5, kind: input, shape index: {}]
  %s6 = inlined_call_operand.hbm [shape: f32[1,384], index: 6, kind: output, shape index: {}]
  %s7 = sld [smem:[#allocation0]]
  $region61: #{tpu_custom_call.1} parent=0
    _
  %s9 = ssub.s32 1, %s7
  %s10 = scalar_select 0, %s9, %s7
  $region1: #{tpu_custom_call.1} parent=0
    #allocation2 [shape = 'u8[512]{0}', space=smem, size = 0x200, scoped, tag = 'input window, operand 0, single buffered']
    #allocation3 [shape = 's32[2]{0}', space=sflag, size = 0x8, scoped, tag = 'scoped memory for tpu_custom_call.1']
    #allocation4 [shape = 's32[2]{0}', space=sflag, size = 0x8, scoped, tag = 'scoped memory for tpu_custom_call.1']
    #allocation5 [shape = 'u8[1024]{0}', space=vmem, size = 0x400, scoped, tag = 'output window, operand 0']
    %11 = vsyncpa [#allocation4], 0
    %12 = vsyncpa [#allocation3], 0
    %s13 = scalar_lea.sflag [#allocation3], 1
    %14 = vsyncpa %s13, 0
    loop: start=0, step=1, limit=5
    $region2: #{tpu_custom_call.1} parent=1 // loop_pre_header
      _
    $region3: #{tpu_custom_call.1} parent=1 // loop_header
      %s16 = sphi 0, %s20
      %p17 = scmp.ge.s32.totalorder %s16, 5
      %s24 = sphi 0, %s24
      %s26 = sphi 0, %s24
      %s27 = sphi 0, %s26
      %s41 = sphi 0, %s27
      %s47 = sphi 0, %s49
      %s50 = sphi 0, %s47
      %s51 = sphi 0, %s50
      %s67 = sphi 0, %s51
      %s71 = sphi 0, %s71
      %s73 = sphi 0, %s71
      %s74 = sphi 0, %s73
      %s88 = sphi 0, %s74
      %s92 = sphi 0, %s92
      %s94 = sphi 0, %s92
      %s95 = sphi 0, %s94
      %s109 = sphi 0, %s95
      %s113 = sphi 0, %s113
      %s115 = sphi 0, %s113
      %s116 = sphi 0, %s115
      %s130 = sphi 0, %s116
      %s134 = sphi 0, %s134
      %s136 = sphi 0, %s134
      %s137 = sphi 0, %s136
      %s151 = sphi 0, %s137
      %s157 = sphi 0, %s159
      %s160 = sphi 0, %s157
      %s161 = sphi 0, %s160
      %s177 = sphi 0, %s161
    $region4: #{tpu_custom_call.1} parent=1 // loop_header_branch
      %19 = sbr.rel (%p17) target = $region8
    $region5: #{tpu_custom_call.1} parent=1 // loop_body
      %s21 = ssub.s32 %s16, 1
      %s22 = ssub.s32 %s16, 2
      %s23 = sadd.s32 %s16, 1
      %s25 = sadd.s32 %s24, 1
      %p28 = scmp.eq.s32.totalorder %s16, 2
      %p29 = scmp.ne.s32.totalorder %s24, %s26
      %p30 = scmp.eq.s32.totalorder %s16, 0
      %p31 = por %p29, %p30
      %p32 = scmp.ne.s32.totalorder %s24, %s26
      %p33 = scmp.eq.s32.totalorder %s21, 2
      %p34 = por %p32, %p33
      %p35 = scmp.ne.s32.totalorder %s26, %s27
      %p36 = scmp.eq.s32.totalorder %s21, 0
      %p37 = por %p35, %p36
      %p38 = scmp.ne.s32.totalorder %s26, %s27
      %p39 = scmp.eq.s32.totalorder %s22, 2
      %p40 = por %p38, %p39
      %p42 = scmp.ne.s32.totalorder %s27, %s41
      %p43 = scmp.eq.s32.totalorder %s22, 0
      %p44 = por %p42, %p43
      %s45 = ssub.s32 %s16, %s23
      %p46 = scmp.eq.s32.totalorder %s45, 0
      %s48 = sadd.s32 %s47, 1
      %s49 = scalar_select %p46, %s47, %s48
      %p52 = pneg %p46
      %p53 = scmp.eq.s32.totalorder %s16, 2
      %p54 = por %p52, %p53
      %p55 = scmp.ne.s32.totalorder %s47, %s50
      %p56 = scmp.eq.s32.totalorder %s16, 0
      %p57 = por %p55, %p56
      %p58 = scmp.ne.s32.totalorder %s47, %s50
      %p59 = scmp.eq.s32.totalorder %s21, 2
      %p60 = por %p58, %p59
      %p61 = scmp.ne.s32.totalorder %s50, %s51
      %p62 = scmp.eq.s32.totalorder %s21, 0
      %p63 = por %p61, %p62
      %p64 = scmp.ne.s32.totalorder %s50, %s51
      %p65 = scmp.eq.s32.totalorder %s22, 2
      %p66 = por %p64, %p65
      %p68 = scmp.ne.s32.totalorder %s51, %s67
      %p69 = scmp.eq.s32.totalorder %s22, 0
      %p70 = por %p68, %p69
      %s72 = sadd.s32 %s71, 1
      %p75 = scmp.eq.s32.totalorder %s16, 2
      %p76 = scmp.ne.s32.totalorder %s71, %s73
      %p77 = scmp.eq.s32.totalorder %s16, 0
      %p78 = por %p76, %p77
      %p79 = scmp.ne.s32.totalorder %s71, %s73
      %p80 = scmp.eq.s32.totalorder %s21, 2
      %p81 = por %p79, %p80
      %p82 = scmp.ne.s32.totalorder %s73, %s74
      %p83 = scmp.eq.s32.totalorder %s21, 0
      %p84 = por %p82, %p83
      %p85 = scmp.ne.s32.totalorder %s73, %s74
      %p86 = scmp.eq.s32.totalorder %s22, 2
      %p87 = por %p85, %p86
      %p89 = scmp.ne.s32.totalorder %s74, %s88
      %p90 = scmp.eq.s32.totalorder %s22, 0
      %p91 = por %p89, %p90
      %s93 = sadd.s32 %s92, 1
      %p96 = scmp.eq.s32.totalorder %s16, 2
      %p97 = scmp.ne.s32.totalorder %s92, %s94
      %p98 = scmp.eq.s32.totalorder %s16, 0
      %p99 = por %p97, %p98
      %p100 = scmp.ne.s32.totalorder %s92, %s94
      %p101 = scmp.eq.s32.totalorder %s21, 2
      %p102 = por %p100, %p101
      %p103 = scmp.ne.s32.totalorder %s94, %s95
      %p104 = scmp.eq.s32.totalorder %s21, 0
      %p105 = por %p103, %p104
      %p106 = scmp.ne.s32.totalorder %s94, %s95
      %p107 = scmp.eq.s32.totalorder %s22, 2
      %p108 = por %p106, %p107
      %p110 = scmp.ne.s32.totalorder %s95, %s109
      %p111 = scmp.eq.s32.totalorder %s22, 0
      %p112 = por %p110, %p111
      %s114 = sadd.s32 %s113, 1
      %p117 = scmp.eq.s32.totalorder %s16, 2
      %p118 = scmp.ne.s32.totalorder %s113, %s115
      %p119 = scmp.eq.s32.totalorder %s16, 0
      %p120 = por %p118, %p119
      %p121 = scmp.ne.s32.totalorder %s113, %s115
      %p122 = scmp.eq.s32.totalorder %s21, 2
      %p123 = por %p121, %p122
      %p124 = scmp.ne.s32.totalorder %s115, %s116
      %p125 = scmp.eq.s32.totalorder %s21, 0
      %p126 = por %p124, %p125
      %p127 = scmp.ne.s32.totalorder %s115, %s116
      %p128 = scmp.eq.s32.totalorder %s22, 2
      %p129 = por %p127, %p128
      %p131 = scmp.ne.s32.totalorder %s116, %s130
      %p132 = scmp.eq.s32.totalorder %s22, 0
      %p133 = por %p131, %p132
      %s135 = sadd.s32 %s134, 1
      %p138 = scmp.eq.s32.totalorder %s16, 2
      %p139 = scmp.ne.s32.totalorder %s134, %s136
      %p140 = scmp.eq.s32.totalorder %s16, 0
      %p141 = por %p139, %p140
      %p142 = scmp.ne.s32.totalorder %s134, %s136
      %p143 = scmp.eq.s32.totalorder %s21, 2
      %p144 = por %p142, %p143
      %p145 = scmp.ne.s32.totalorder %s136, %s137
      %p146 = scmp.eq.s32.totalorder %s21, 0
      %p147 = por %p145, %p146
      %p148 = scmp.ne.s32.totalorder %s136, %s137
      %p149 = scmp.eq.s32.totalorder %s22, 2
      %p150 = por %p148, %p149
      %p152 = scmp.ne.s32.totalorder %s137, %s151
      %p153 = scmp.eq.s32.totalorder %s22, 0
      %p154 = por %p152, %p153
      %s155 = ssub.s32 %s16, %s23
      %p156 = scmp.eq.s32.totalorder %s155, 0
      %s158 = sadd.s32 %s157, 1
      %s159 = scalar_select %p156, %s157, %s158
      %p162 = pneg %p156
      %p163 = scmp.eq.s32.totalorder %s16, 2
      %p164 = por %p162, %p163
      %p165 = scmp.ne.s32.totalorder %s157, %s160
      %p166 = scmp.eq.s32.totalorder %s16, 0
      %p167 = por %p165, %p166
      %p168 = scmp.ne.s32.totalorder %s157, %s160
      %p169 = scmp.eq.s32.totalorder %s21, 2
      %p170 = por %p168, %p169
      %p171 = scmp.ne.s32.totalorder %s160, %s161
      %p172 = scmp.eq.s32.totalorder %s21, 0
      %p173 = por %p171, %p172
      %p174 = scmp.ne.s32.totalorder %s160, %s161
      %p175 = scmp.eq.s32.totalorder %s22, 2
      %p176 = por %p174, %p175
      %p178 = scmp.ne.s32.totalorder %s161, %s177
      %p179 = scmp.eq.s32.totalorder %s22, 0
      %p180 = por %p178, %p179
      %p181 = scmp.le.s32.totalorder 1, %s16
      %p182 = scmp.lt.s32.totalorder %s16, 4
      %p183 = pnand %p181, %p182
      %p184 = pneg %p183
      // Predicated region
      $region9: #{tpu_custom_call.1} parent=5 // pred_check
        _
      $region10: #{tpu_custom_call.1} parent=5 // pred_check_branch
        %186 = sbr.rel (%p183) target = $region12
      $region11: #{tpu_custom_call.1} parent=5 // pred_region
        %s187 = ssub.s32 %s16, 1
        // Predicated region
        $region13: #{tpu_custom_call.1} parent=11 // pred_check
          %p188 = pneg %p37
        $region14: #{tpu_custom_call.1} parent=11 // pred_check_branch
          %190 = sbr.rel (%p188) target = $region16
        $region15: #{tpu_custom_call.1} parent=11 // pred_region
          %s192 = ssub.s32 16, 16
          %193 = vsyncadd [#allocation4], %s192
          %s195 = sshll.u32 %s0, 4
          %s196 = int_to_ptr.vmem [resolvable:$true] %s195
          %198 = dma.vmem_to_smem %s196, 16, [#allocation2], [#allocation4]
        $region16: #{tpu_custom_call.1} parent=11 // pred_fallthru
          _
        // Predicated region
        $region17: #{tpu_custom_call.1} parent=11 // pred_check
          %p199 = pneg %p84
        $region18: #{tpu_custom_call.1} parent=11 // pred_check_branch
          %201 = sbr.rel (%p199) target = $region20
        $region19: #{tpu_custom_call.1} parent=11 // pred_region
          _
        $region20: #{tpu_custom_call.1} parent=11 // pred_fallthru
          _
        // Predicated region
        $region21: #{tpu_custom_call.1} parent=11 // pred_check
          %p202 = pneg %p105
        $region22: #{tpu_custom_call.1} parent=11 // pred_check_branch
          %204 = sbr.rel (%p202) target = $region24
        $region23: #{tpu_custom_call.1} parent=11 // pred_region
          _
        $region24: #{tpu_custom_call.1} parent=11 // pred_fallthru
          _
        // Predicated region
        $region25: #{tpu_custom_call.1} parent=11 // pred_check
          %p205 = pneg %p126
        $region26: #{tpu_custom_call.1} parent=11 // pred_check_branch
          %207 = sbr.rel (%p205) target = $region28
        $region27: #{tpu_custom_call.1} parent=11 // pred_region
          _
        $region28: #{tpu_custom_call.1} parent=11 // pred_fallthru
          _
        // Predicated region
        $region29: #{tpu_custom_call.1} parent=11 // pred_check
          %p208 = pneg %p147
        $region30: #{tpu_custom_call.1} parent=11 // pred_check_branch
          %210 = sbr.rel (%p208) target = $region32
        $region31: #{tpu_custom_call.1} parent=11 // pred_region
          _
        $region32: #{tpu_custom_call.1} parent=11 // pred_fallthru
          _
      $region12: #{tpu_custom_call.1} parent=5 // pred_fallthru
        _
      %p211 = scmp.lt.s32.totalorder %s16, 3
      // Predicated region
      $region33: #{tpu_custom_call.1} parent=5 // pred_check
        %p212 = pneg %p211
      $region34: #{tpu_custom_call.1} parent=5 // pred_check_branch
        %214 = sbr.rel (%p212) target = $region36
      $region35: #{tpu_custom_call.1} parent=5 // pred_region
        // Predicated region
        $region37: #{tpu_custom_call.1} parent=35 // pred_check
          %p215 = pneg %p57
        $region38: #{tpu_custom_call.1} parent=35 // pred_check_branch
          %217 = sbr.rel (%p215) target = $region40
        $region39: #{tpu_custom_call.1} parent=35 // pred_region
          %p218 = scmp.lt.s32.totalorder %s16, 2
          %s219 = scalar_select %p218, %s16, 2
          %s220 = smul.addr %s219, 8
          %s221 = scalar_lea.vmem %s1, %s220
        $region40: #{tpu_custom_call.1} parent=35 // pred_fallthru
          _
      $region36: #{tpu_custom_call.1} parent=5 // pred_fallthru
        _
      %p222 = scmp.le.s32.totalorder 1, %s16
      %p223 = scmp.lt.s32.totalorder %s16, 4
      %p224 = pnand %p222, %p223
      %p225 = pneg %p224
      // Predicated region
      $region41: #{tpu_custom_call.1} parent=5 // pred_check
        _
      $region42: #{tpu_custom_call.1} parent=5 // pred_check_branch
        %227 = sbr.rel (%p224) target = $region44
      $region43: #{tpu_custom_call.1} parent=5 // pred_region
        %s228 = ssub.s32 %s16, 1
        // Predicated region
        $region45: #{tpu_custom_call.1} parent=43 // pred_check
          %p229 = pneg %p37
        $region46: #{tpu_custom_call.1} parent=43 // pred_check_branch
          %231 = sbr.rel (%p229) target = $region48
        $region47: #{tpu_custom_call.1} parent=43 // pred_region
          %232 = dma.done [#allocation4], 16
        $region48: #{tpu_custom_call.1} parent=43 // pred_fallthru
          _
        %233 = sfence
        %p234 = pneg %p37
        %p235 = pneg %p34
        %p236 = scmp.lt.s32.totalorder %s21, 2
        %s237 = scalar_select %p236, %s21, 2
        %s238 = smul.addr %s237, 8
        %s239 = scalar_lea.vmem %s1, %s238
        %p240 = pneg %p63
        %p241 = pneg %p60
        %p242 = pneg %p84
        %p243 = pneg %p81
        %p244 = pneg %p105
        %p245 = pneg %p102
        %p246 = pneg %p126
        %p247 = pneg %p123
        %p248 = pneg %p147
        %p249 = pneg %p144
        %p250 = pneg %p173
        %p251 = pneg %p170
        %s252 = sand.u32 %s160, 1
        %s253 = scalar_lea.sflag [#allocation3], %s252
        %s254 = sand.u32 %s160, 1
        %s255 = scalar_lea.vmem [#allocation5], %s254
        %p256 = scmp.lt.s32.totalorder %s21, 2
        %s257 = scalar_select %p256, %s21, 2
        %s258 = smul.addr %s257, 8
        %s259 = scalar_lea.vmem %s1, %s258
        %s260 = sld [smem:[#allocation2]]
        %s261 = sld [smem:[#allocation2 + $0x1]]
        %s262 = sld [smem:[#allocation2 + $0x2]]
        %v263 = vld [vmem:[%s259] sm:$0x1]
        %v264 = vld [vmem:[%s259 + $0x1] sm:$0x1]
        %v265 = vld [vmem:[%s259 + $0x2] sm:$0x1]
        %v266 = vld [vmem:[%s259 + $0x3] sm:$0x1]
        %v267 = vld [vmem:[%s259 + $0x4] sm:$0x1]
        %v268 = vld [vmem:[%s259 + $0x5] sm:$0x1]
        %v269 = vld [vmem:[%s259 + $0x6] sm:$0x1]
        %v270 = vand.u32 2147483647, %v263
        %vm271 = vcmp.le.f32.partialorder %v270, 0.7853982
        %vm272 = vcmp.lt.s32.totalorder %v263, 0
        %v273 = vand.u32 %v263, 2139095040
        %v274 = vshrl.u32 %v273, 23
        %v275 = vsub.s32 %v274, 127
        %v276 = vand.u32 2147483647, %v263
        %v277 = vand.u32 %v276, 8388607
        %v278 = vor.u32 %v277, 8388608
        %v279 = vsub.s32 0, %v278
        %v280 = vadd.s32 %v275, 1
        %vm281 = vcmp.gt.s32.totalorder %v280, 0
        %v282 = vsel %vm281, %v280, 0
        %v283 = vshrl.u32 %v282, 5
        %v284 = vand.u32 %v282, 31
        %v285 = vsub.s32 32, %v284
        %v286 = vshrl.u32 683565275, %v285
        %v287 = vshll.u32 683565275, %v284
        %v288 = vshrl.u32 2475754826, %v285
        %v289 = vor.u32 %v287, %v288
        %v290 = vshll.u32 2475754826, %v284
        %v291 = vshrl.u32 2131351028, %v285
        %v292 = vor.u32 %v290, %v291
        %v293 = vshll.u32 2131351028, %v284
        %v294 = vshrl.u32 2102212464, %v285
        %v295 = vor.u32 %v293, %v294
        %v296 = vshll.u32 2102212464, %v284
        %v297 = vshrl.u32 920167782, %v285
        %v298 = vor.u32 %v296, %v297
        %v299 = vshll.u32 920167782, %v284
        %v300 = vshrl.u32 1326507024, %v285
        %v301 = vor.u32 %v299, %v300
        %vm302 = vcmp.lt.s32.totalorder %v283, 1
        %vm303 = vcmp.lt.s32.totalorder %v283, 2
        %vm304 = vcmp.lt.s32.totalorder %v283, 3
        %vm305 = vcmp.lt.s32.totalorder %v283, 4
        %v306 = vsel %vm302, %v286, %v289
        %v307 = vsel %vm305, %v295, 2102212464
        %v308 = vsel %vm304, %v292, %v307
        %v309 = vsel %vm303, %v306, %v308
        %v310 = vsel %vm302, %v289, %v292
        %v311 = vsel %vm305, %v298, 920167782
        %v312 = vsel %vm304, %v295, %v311
        %v313 = vsel %vm303, %v310, %v312
        %v314 = vsel %vm302, %v292, %v295
        %v315 = vsel %vm305, %v301, 1326507024
        %v316 = vsel %vm304, %v298, %v315
        %v317 = vsel %vm303, %v314, %v316
        %v318 = vshll.u32 %v278, 8
        %v319 = vmul.u32.u64.compose %v318, %v317
        %v320 = vextract.low.u32 %v319
        %v321 = vextract.high.u32 %v319
        %v322 = vmul.u32.u64.compose %v318, %v313
        %v323 = vextract.low.u32 %v322
        %v324 = vextract.high.u32 %v322
        %v325 = vmul.u32 %v318, %v309
        %v326 = vadd.s32 %v321, %v323
        %vm327 = vc.u32 %v321, %v323
        %v328 = vadd.s32 %v324, 1
        %v329 = vsel %vm327, %v328, %v324
        %v330 = vadd.s32 %v325, %v329
        %v331 = vadd.s32 %v330, 536870912
        %v332 = vshrl.u32 %v331, 30
        %v333 = vshll.u32 %v332, 30
        %v334 = vsub.s32 %v330, %v333
        %vm335 = vcmp.lt.s32.totalorder %v334, 0
        %v336 = vsub.s32 0, %v334
        %v337 = vsel %vm335, %v336, %v334
        %v338 = vclz %v337
        %v339 = vsub.s32 %v338, 2
        %vm340 = vcmp.gt.s32.totalorder 0, %v339
        %v341 = vsel %vm340, 0, %v339
        %v342 = vsub.s32 32, %v341
        %v343 = vshll.u32 %v334, %v341
        %v344 = vshrl.u32 %v326, %v342
        %v345 = vor.u32 %v343, %v344
        %v346 = vsub.s32 4294967266, %v341
        %v347 = vadd.s32 %v346, 127
        %v348 = vshll.u32 %v347, 23
        %v349 = vor.u32 4788187, %v348
        %v350 = vand.u32 2147483647, %v349
        %v352 = vcvt.s32.f32 %v345
        %v353 = vmul.f32 %v352, %v350
        %v354 = vxor.u32 %v353, 2147483648
        %v355 = vsel %vm272, %v354, %v353
        %v356 = vsub.s32 4, %v332
        %v357 = vsel %vm272, %v356, %v332
        %v358 = vsel %vm271, %v263, %v355
        %v359 = vsel %vm271, 0, %v357
        %v360 = vcosq.f32.pop %v358
        %v361 = vsinq.f32.pop %v358
        %vm362 = vweird.f32 %v263
        %v363 = vand.u32 %v359, 3
        %vm364 = vcmp.lt.s32.totalorder %v363, 2
        %vm365 = vcmp.eq.s32.totalorder %v363, 0
        %v366 = vxor.u32 %v361, 2147483648
        %v367 = vsel %vm365, %v360, %v366
        %vm368 = vcmp.eq.s32.totalorder %v363, 2
        %v369 = vxor.u32 %v360, 2147483648
        %v370 = vsel %vm368, %v369, %v361
        %v371 = vsel %vm364, %v367, %v370
        %v372 = vsel %vm362, nan, %v371
        %v373 = vand.u32 2147483647, %v263
        %vm374 = vcmp.le.f32.partialorder %v373, 0.7853982
        %vm375 = vcmp.lt.s32.totalorder %v263, 0
        %v376 = vand.u32 %v263, 2139095040
        %v377 = vshrl.u32 %v376, 23
        %v378 = vsub.s32 %v377, 127
        %v379 = vand.u32 2147483647, %v263
        %v380 = vand.u32 %v379, 8388607
        %v381 = vor.u32 %v380, 8388608
        %v382 = vsub.s32 0, %v381
        %v383 = vadd.s32 %v378, 1
        %vm384 = vcmp.gt.s32.totalorder %v383, 0
        %v385 = vsel %vm384, %v383, 0
        %v386 = vshrl.u32 %v385, 5
        %v387 = vand.u32 %v385, 31
        %v388 = vsub.s32 32, %v387
        %v389 = vshrl.u32 683565275, %v388
        %v390 = vshll.u32 683565275, %v387
        %v391 = vshrl.u32 2475754826, %v388
        %v392 = vor.u32 %v390, %v391
        %v393 = vshll.u32 2475754826, %v387
        %v394 = vshrl.u32 2131351028, %v388
        %v395 = vor.u32 %v393, %v394
        %v396 = vshll.u32 2131351028, %v387
        %v397 = vshrl.u32 2102212464, %v388
        %v398 = vor.u32 %v396, %v397
        %v399 = vshll.u32 2102212464, %v387
        %v400 = vshrl.u32 920167782, %v388
        %v401 = vor.u32 %v399, %v400
        %v402 = vshll.u32 920167782, %v387
        %v403 = vshrl.u32 1326507024, %v388
        %v404 = vor.u32 %v402, %v403
        %vm405 = vcmp.lt.s32.totalorder %v386, 1
        %vm406 = vcmp.lt.s32.totalorder %v386, 2
        %vm407 = vcmp.lt.s32.totalorder %v386, 3
        %vm408 = vcmp.lt.s32.totalorder %v386, 4
        %v409 = vsel %vm405, %v389, %v392
        %v410 = vsel %vm408, %v398, 2102212464
        %v411 = vsel %vm407, %v395, %v410
        %v412 = vsel %vm406, %v409, %v411
        %v413 = vsel %vm405, %v392, %v395
        %v414 = vsel %vm408, %v401, 920167782
        %v415 = vsel %vm407, %v398, %v414
        %v416 = vsel %vm406, %v413, %v415
        %v417 = vsel %vm405, %v395, %v398
        %v418 = vsel %vm408, %v404, 1326507024
        %v419 = vsel %vm407, %v401, %v418
        %v420 = vsel %vm406, %v417, %v419
        %v421 = vshll.u32 %v381, 8
        %v422 = vmul.u32.u64.compose %v421, %v420
        %v423 = vextract.low.u32 %v422
        %v424 = vextract.high.u32 %v422
        %v425 = vmul.u32.u64.compose %v421, %v416
        %v426 = vextract.low.u32 %v425
        %v427 = vextract.high.u32 %v425
        %v428 = vmul.u32 %v421, %v412
        %v429 = vadd.s32 %v424, %v426
        %vm430 = vc.u32 %v424, %v426
        %v431 = vadd.s32 %v427, 1
        %v432 = vsel %vm430, %v431, %v427
        %v433 = vadd.s32 %v428, %v432
        %v434 = vadd.s32 %v433, 536870912
        %v435 = vshrl.u32 %v434, 30
        %v436 = vshll.u32 %v435, 30
        %v437 = vsub.s32 %v433, %v436
        %vm438 = vcmp.lt.s32.totalorder %v437, 0
        %v439 = vsub.s32 0, %v437
        %v440 = vsel %vm438, %v439, %v437
        %v441 = vclz %v440
        %v442 = vsub.s32 %v441, 2
        %vm443 = vcmp.gt.s32.totalorder 0, %v442
        %v444 = vsel %vm443, 0, %v442
        %v445 = vsub.s32 32, %v444
        %v446 = vshll.u32 %v437, %v444
        %v447 = vshrl.u32 %v429, %v445
        %v448 = vor.u32 %v446, %v447
        %v449 = vsub.s32 4294967266, %v444
        %v450 = vadd.s32 %v449, 127
        %v451 = vshll.u32 %v450, 23
        %v452 = vor.u32 4788187, %v451
        %v453 = vand.u32 2147483647, %v452
        %v455 = vcvt.s32.f32 %v448
        %v456 = vmul.f32 %v455, %v453
        %v457 = vxor.u32 %v456, 2147483648
        %v458 = vsel %vm375, %v457, %v456
        %v459 = vsub.s32 4, %v435
        %v460 = vsel %vm375, %v459, %v435
        %v461 = vsel %vm374, %v263, %v458
        %v462 = vsel %vm374, 0, %v460
        %v463 = vcosq.f32.pop %v461
        %v464 = vsinq.f32.pop %v461
        %vm465 = vweird.f32 %v263
        %v466 = vadd.s32 %v462, 3
        %v467 = vand.u32 %v466, 3
        %vm468 = vcmp.lt.s32.totalorder %v467, 2
        %vm469 = vcmp.eq.s32.totalorder %v467, 0
        %v470 = vxor.u32 %v464, 2147483648
        %v471 = vsel %vm469, %v463, %v470
        %vm472 = vcmp.eq.s32.totalorder %v467, 2
        %v473 = vxor.u32 %v463, 2147483648
        %v474 = vsel %vm472, %v473, %v464
        %v475 = vsel %vm468, %v471, %v474
        %v476 = vsel %vm465, nan, %v475
        %v477 = vsub.f32 1.0, %v372
        %v478 = vmul.f32 %v477, %v264
        %v479 = vmul.f32 %v478, %v264
        %v480 = vadd.f32 %v372, %v479
        %v481 = vmul.f32 %v478, %v265
        %v482 = vmul.f32 %v266, %v476
        %v483 = vsub.f32 %v481, %v482
        %v484 = vmul.f32 %v478, %v266
        %v485 = vmul.f32 %v265, %v476
        %v486 = vadd.f32 %v484, %v485
        %v487 = vadd.f32 %v481, %v482
        %v488 = vmul.f32 %v477, %v265
        %v489 = vmul.f32 %v488, %v265
        %v490 = vadd.f32 %v372, %v489
        %v491 = vmul.f32 %v488, %v266
        %v492 = vmul.f32 %v264, %v476
        %v493 = vsub.f32 %v491, %v492
        %v494 = vsub.f32 %v484, %v485
        %v495 = vadd.f32 %v491, %v492
        %v496 = vmul.f32 %v477, %v266
        %v497 = vmul.f32 %v496, %v266
        %v498 = vadd.f32 %v372, %v497
        %v499 = vld [vmem:[%s2] sm:$0xff]
        %v500 = vld [vmem:[%s2 + $0x8] sm:$0xff]
        %v501 = vld [vmem:[%s2 + $0x10] sm:$0xff]
        %v502 = vld [vmem:[%s2 + $0x18] sm:$0xff]
        %v503 = vld [vmem:[%s2 + $0x20] sm:$0xff]
        %v504 = vld [vmem:[%s2 + $0x28] sm:$0xff]
        %v505 = vld [vmem:[%s2 + $0x30] sm:$0xff]
        %v506 = vld [vmem:[%s2 + $0x38] sm:$0xff]
        %v507 = vlaneseq
        %v508 = vshrl.u32 %v507, 7
        %v509 = vsub.s32 0, %v508
        %v510 = vrot.slane %v480, %v509
        %512 = vset.pattern.permute.xlu0 0
        %513 = vperm.xlu0 %512, %v499
        %v514 = vpop.permute.xlu0 %513
        %517 = vset.pattern.permute.xlu0 0
        %518 = vperm.xlu0 %517, %v500
        %v519 = vpop.permute.xlu0 %518
        %522 = vset.pattern.permute.xlu0 0
        %523 = vperm.xlu0 %522, %v501
        %v524 = vpop.permute.xlu0 %523
        %527 = vset.pattern.permute.xlu0 0
        %528 = vperm.xlu0 %527, %v502
        %v529 = vpop.permute.xlu0 %528
        %532 = vset.pattern.permute.xlu0 0
        %533 = vperm.xlu0 %532, %v503
        %v534 = vpop.permute.xlu0 %533
        %537 = vset.pattern.permute.xlu0 0
        %538 = vperm.xlu0 %537, %v504
        %v539 = vpop.permute.xlu0 %538
        %542 = vset.pattern.permute.xlu0 0
        %543 = vperm.xlu0 %542, %v505
        %v544 = vpop.permute.xlu0 %543
        %547 = vset.pattern.permute.xlu0 0
        %548 = vperm.xlu0 %547, %v506
        %v549 = vpop.permute.xlu0 %548
        %v551 = vmul.f32 %v510, %v514
        %v552 = vmul.f32 %v510, %v519
        %v553 = vmul.f32 %v510, %v524
        %v554 = vmul.f32 %v510, %v529
        %v555 = vmul.f32 %v510, %v534
        %v556 = vmul.f32 %v510, %v539
        %v557 = vmul.f32 %v510, %v544
        %v558 = vmul.f32 %v510, %v549
        %v559 = vlaneseq
        %v560 = vshrl.u32 %v559, 7
        %v561 = vsub.s32 0, %v560
        %v562 = vrot.slane %v483, %v561
        %563 = vset.pattern.permute.xlu0 1
        %564 = vperm.xlu0 %563, %v499
        %v565 = vpop.permute.xlu0 %564
        %567 = vset.pattern.permute.xlu0 1
        %568 = vperm.xlu0 %567, %v500
        %v569 = vpop.permute.xlu0 %568
        %571 = vset.pattern.permute.xlu0 1
        %572 = vperm.xlu0 %571, %v501
        %v573 = vpop.permute.xlu0 %572
        %575 = vset.pattern.permute.xlu0 1
        %576 = vperm.xlu0 %575, %v502
        %v577 = vpop.permute.xlu0 %576
        %579 = vset.pattern.permute.xlu0 1
        %580 = vperm.xlu0 %579, %v503
        %v581 = vpop.permute.xlu0 %580
        %583 = vset.pattern.permute.xlu0 1
        %584 = vperm.xlu0 %583, %v504
        %v585 = vpop.permute.xlu0 %584
        %587 = vset.pattern.permute.xlu0 1
        %588 = vperm.xlu0 %587, %v505
        %v589 = vpop.permute.xlu0 %588
        %591 = vset.pattern.permute.xlu0 1
        %592 = vperm.xlu0 %591, %v506
        %v593 = vpop.permute.xlu0 %592
        %v595 = vmul.f32 %v562, %v565
        %v596 = vmul.f32 %v562, %v569
        %v597 = vmul.f32 %v562, %v573
        %v598 = vmul.f32 %v562, %v577
        %v599 = vmul.f32 %v562, %v581
        %v600 = vmul.f32 %v562, %v585
        %v601 = vmul.f32 %v562, %v589
        %v602 = vmul.f32 %v562, %v593
        %v603 = vadd.f32 %v551, %v595
        %v604 = vadd.f32 %v552, %v596
        %v605 = vadd.f32 %v553, %v597
        %v606 = vadd.f32 %v554, %v598
        %v607 = vadd.f32 %v555, %v599
        %v608 = vadd.f32 %v556, %v600
        %v609 = vadd.f32 %v557, %v601
        %v610 = vadd.f32 %v558, %v602
        %v611 = vlaneseq
        %v612 = vshrl.u32 %v611, 7
        %v613 = vsub.s32 0, %v612
        %v614 = vrot.slane %v486, %v613
        %615 = vset.pattern.permute.xlu0 2
        %616 = vperm.xlu0 %615, %v499
        %v617 = vpop.permute.xlu0 %616
        %619 = vset.pattern.permute.xlu0 2
        %620 = vperm.xlu0 %619, %v500
        %v621 = vpop.permute.xlu0 %620
        %623 = vset.pattern.permute.xlu0 2
        %624 = vperm.xlu0 %623, %v501
        %v625 = vpop.permute.xlu0 %624
        %627 = vset.pattern.permute.xlu0 2
        %628 = vperm.xlu0 %627, %v502
        %v629 = vpop.permute.xlu0 %628
        %631 = vset.pattern.permute.xlu0 2
        %632 = vperm.xlu0 %631, %v503
        %v633 = vpop.permute.xlu0 %632
        %635 = vset.pattern.permute.xlu0 2
        %636 = vperm.xlu0 %635, %v504
        %v637 = vpop.permute.xlu0 %636
        %639 = vset.pattern.permute.xlu0 2
        %640 = vperm.xlu0 %639, %v505
        %v641 = vpop.permute.xlu0 %640
        %643 = vset.pattern.permute.xlu0 2
        %644 = vperm.xlu0 %643, %v506
        %v645 = vpop.permute.xlu0 %644
        %v647 = vmul.f32 %v614, %v617
        %v648 = vmul.f32 %v614, %v621
        %v649 = vmul.f32 %v614, %v625
        %v650 = vmul.f32 %v614, %v629
        %v651 = vmul.f32 %v614, %v633
        %v652 = vmul.f32 %v614, %v637
        %v653 = vmul.f32 %v614, %v641
        %v654 = vmul.f32 %v614, %v645
        %v655 = vadd.f32 %v603, %v647
        %v656 = vadd.f32 %v604, %v648
        %v657 = vadd.f32 %v605, %v649
        %v658 = vadd.f32 %v606, %v650
        %v659 = vadd.f32 %v607, %v651
        %v660 = vadd.f32 %v608, %v652
        %v661 = vadd.f32 %v609, %v653
        %v662 = vadd.f32 %v610, %v654
        %v663 = vlaneseq
        %v664 = vshrl.u32 %v663, 7
        %v665 = vsub.s32 0, %v664
        %v666 = vrot.slane %v487, %v665
        %v667 = vmul.f32 %v666, %v514
        %v668 = vmul.f32 %v666, %v519
        %v669 = vmul.f32 %v666, %v524
        %v670 = vmul.f32 %v666, %v529
        %v671 = vmul.f32 %v666, %v534
        %v672 = vmul.f32 %v666, %v539
        %v673 = vmul.f32 %v666, %v544
        %v674 = vmul.f32 %v666, %v549
        %v675 = vlaneseq
        %v676 = vshrl.u32 %v675, 7
        %v677 = vsub.s32 0, %v676
        %v678 = vrot.slane %v490, %v677
        %v679 = vmul.f32 %v678, %v565
        %v680 = vmul.f32 %v678, %v569
        %v681 = vmul.f32 %v678, %v573
        %v682 = vmul.f32 %v678, %v577
        %v683 = vmul.f32 %v678, %v581
        %v684 = vmul.f32 %v678, %v585
        %v685 = vmul.f32 %v678, %v589
        %v686 = vmul.f32 %v678, %v593
        %v687 = vadd.f32 %v667, %v679
        %v688 = vadd.f32 %v668, %v680
        %v689 = vadd.f32 %v669, %v681
        %v690 = vadd.f32 %v670, %v682
        %v691 = vadd.f32 %v671, %v683
        %v692 = vadd.f32 %v672, %v684
        %v693 = vadd.f32 %v673, %v685
        %v694 = vadd.f32 %v674, %v686
        %v695 = vlaneseq
        %v696 = vshrl.u32 %v695, 7
        %v697 = vsub.s32 0, %v696
        %v698 = vrot.slane %v493, %v697
        %v699 = vmul.f32 %v698, %v617
        %v700 = vmul.f32 %v698, %v621
        %v701 = vmul.f32 %v698, %v625
        %v702 = vmul.f32 %v698, %v629
        %v703 = vmul.f32 %v698, %v633
        %v704 = vmul.f32 %v698, %v637
        %v705 = vmul.f32 %v698, %v641
        %v706 = vmul.f32 %v698, %v645
        %v707 = vadd.f32 %v687, %v699
        %v708 = vadd.f32 %v688, %v700
        %v709 = vadd.f32 %v689, %v701
        %v710 = vadd.f32 %v690, %v702
        %v711 = vadd.f32 %v691, %v703
        %v712 = vadd.f32 %v692, %v704
        %v713 = vadd.f32 %v693, %v705
        %v714 = vadd.f32 %v694, %v706
        %v715 = vlaneseq
        %v716 = vshrl.u32 %v715, 7
        %v717 = vsub.s32 0, %v716
        %v718 = vrot.slane %v494, %v717
        %v719 = vmul.f32 %v718, %v514
        %v720 = vmul.f32 %v718, %v519
        %v721 = vmul.f32 %v718, %v524
        %v722 = vmul.f32 %v718, %v529
        %v723 = vmul.f32 %v718, %v534
        %v724 = vmul.f32 %v718, %v539
        %v725 = vmul.f32 %v718, %v544
        %v726 = vmul.f32 %v718, %v549
        %v727 = vlaneseq
        %v728 = vshrl.u32 %v727, 7
        %v729 = vsub.s32 0, %v728
        %v730 = vrot.slane %v495, %v729
        %v731 = vmul.f32 %v730, %v565
        %v732 = vmul.f32 %v730, %v569
        %v733 = vmul.f32 %v730, %v573
        %v734 = vmul.f32 %v730, %v577
        %v735 = vmul.f32 %v730, %v581
        %v736 = vmul.f32 %v730, %v585
        %v737 = vmul.f32 %v730, %v589
        %v738 = vmul.f32 %v730, %v593
        %v739 = vadd.f32 %v719, %v731
        %v740 = vadd.f32 %v720, %v732
        %v741 = vadd.f32 %v721, %v733
        %v742 = vadd.f32 %v722, %v734
        %v743 = vadd.f32 %v723, %v735
        %v744 = vadd.f32 %v724, %v736
        %v745 = vadd.f32 %v725, %v737
        %v746 = vadd.f32 %v726, %v738
        %v747 = vlaneseq
        %v748 = vshrl.u32 %v747, 7
        %v749 = vsub.s32 0, %v748
        %v750 = vrot.slane %v498, %v749
        %v751 = vmul.f32 %v750, %v617
        %v752 = vmul.f32 %v750, %v621
        %v753 = vmul.f32 %v750, %v625
        %v754 = vmul.f32 %v750, %v629
        %v755 = vmul.f32 %v750, %v633
        %v756 = vmul.f32 %v750, %v637
        %v757 = vmul.f32 %v750, %v641
        %v758 = vmul.f32 %v750, %v645
        %v759 = vadd.f32 %v739, %v751
        %v760 = vadd.f32 %v740, %v752
        %v761 = vadd.f32 %v741, %v753
        %v762 = vadd.f32 %v742, %v754
        %v763 = vadd.f32 %v743, %v755
        %v764 = vadd.f32 %v744, %v756
        %v765 = vadd.f32 %v745, %v757
        %v766 = vadd.f32 %v746, %v758
        %v767 = vld [vmem:[%s4] sm:$0xff]
        %v768 = vld [vmem:[%s4 + $0x8] sm:$0xff]
        %v769 = vld [vmem:[%s4 + $0x10] sm:$0xf]
        %v770 = vmul.f32 %v480, %v267
        %v771 = vmul.f32 %v483, %v268
        %v772 = vadd.f32 %v770, %v771
        %v773 = vmul.f32 %v486, %v269
        %v774 = vadd.f32 %v772, %v773
        %v775 = vmul.f32 %v487, %v267
        %v776 = vmul.f32 %v490, %v268
        %v777 = vadd.f32 %v775, %v776
        %v778 = vmul.f32 %v493, %v269
        %v779 = vadd.f32 %v777, %v778
        %v780 = vmul.f32 %v494, %v267
        %v781 = vmul.f32 %v495, %v268
        %v782 = vadd.f32 %v780, %v781
        %v783 = vmul.f32 %v498, %v269
        %v784 = vadd.f32 %v782, %v783
        %v785 = vlaneseq
        %v786 = vshrl.u32 %v785, 7
        %v787 = vsub.s32 0, %v786
        %v788 = vrot.slane %v774, %v787
        %v789 = vadd.f32 %v655, %v788
        %v790 = vadd.f32 %v656, %v788
        %v791 = vadd.f32 %v657, %v788
        %v792 = vadd.f32 %v658, %v788
        %v793 = vadd.f32 %v659, %v788
        %v794 = vadd.f32 %v660, %v788
        %v795 = vadd.f32 %v661, %v788
        %v796 = vadd.f32 %v662, %v788
        %v797 = vlaneseq
        %v798 = vshrl.u32 %v797, 7
        %v799 = vsub.s32 0, %v798
        %v800 = vrot.slane %v779, %v799
        %v801 = vadd.f32 %v707, %v800
        %v802 = vadd.f32 %v708, %v800
        %v803 = vadd.f32 %v709, %v800
        %v804 = vadd.f32 %v710, %v800
        %v805 = vadd.f32 %v711, %v800
        %v806 = vadd.f32 %v712, %v800
        %v807 = vadd.f32 %v713, %v800
        %v808 = vadd.f32 %v714, %v800
        %v809 = vlaneseq
        %v810 = vshrl.u32 %v809, 7
        %v811 = vsub.s32 0, %v810
        %v812 = vrot.slane %v784, %v811
        %v813 = vadd.f32 %v759, %v812
        %v814 = vadd.f32 %v760, %v812
        %v815 = vadd.f32 %v761, %v812
        %v816 = vadd.f32 %v762, %v812
        %v817 = vadd.f32 %v763, %v812
        %v818 = vadd.f32 %v764, %v812
        %v819 = vadd.f32 %v765, %v812
        %v820 = vadd.f32 %v766, %v812
        %v821 = vmul.f32 %v789, %v789
        %v822 = vmul.f32 %v790, %v790
        %v823 = vmul.f32 %v791, %v791
        %v824 = vmul.f32 %v792, %v792
        %v825 = vmul.f32 %v793, %v793
        %v826 = vmul.f32 %v794, %v794
        %v827 = vmul.f32 %v795, %v795
        %v828 = vmul.f32 %v796, %v796
        %v829 = vmul.f32 %v801, %v801
        %v830 = vmul.f32 %v802, %v802
        %v831 = vmul.f32 %v803, %v803
        %v832 = vmul.f32 %v804, %v804
        %v833 = vmul.f32 %v805, %v805
        %v834 = vmul.f32 %v806, %v806
        %v835 = vmul.f32 %v807, %v807
        %v836 = vmul.f32 %v808, %v808
        %v837 = vadd.f32 %v821, %v829
        %v838 = vadd.f32 %v822, %v830
        %v839 = vadd.f32 %v823, %v831
        %v840 = vadd.f32 %v824, %v832
        %v841 = vadd.f32 %v825, %v833
        %v842 = vadd.f32 %v826, %v834
        %v843 = vadd.f32 %v827, %v835
        %v844 = vadd.f32 %v828, %v836
        %v845 = vmul.f32 %v813, %v813
        %v846 = vmul.f32 %v814, %v814
        %v847 = vmul.f32 %v815, %v815
        %v848 = vmul.f32 %v816, %v816
        %v849 = vmul.f32 %v817, %v817
        %v850 = vmul.f32 %v818, %v818
        %v851 = vmul.f32 %v819, %v819
        %v852 = vmul.f32 %v820, %v820
        %v853 = vadd.f32 %v837, %v845
        %v854 = vadd.f32 %v838, %v846
        %v855 = vadd.f32 %v839, %v847
        %v856 = vadd.f32 %v840, %v848
        %v857 = vadd.f32 %v841, %v849
        %v858 = vadd.f32 %v842, %v850
        %v859 = vadd.f32 %v843, %v851
        %v860 = vadd.f32 %v844, %v852
        %v861 = vrsqrt.pop %v853
        %v862 = vmul.f32 %v853, %v861
        %vm863 = vcmp.eq.f32.partialorder %v853, inf
        %v864 = vsel %vm863, %v853, %v862
        %vm865 = vcmp.eq.f32.partialorder %v853, 0.0
        %v866 = vand.u32 %v853, 2147483648
        %v867 = vsel %vm865, %v866, %v864
        %v868 = vrsqrt.pop %v854
        %v869 = vmul.f32 %v854, %v868
        %vm870 = vcmp.eq.f32.partialorder %v854, inf
        %v871 = vsel %vm870, %v854, %v869
        %vm872 = vcmp.eq.f32.partialorder %v854, 0.0
        %v873 = vand.u32 %v854, 2147483648
        %v874 = vsel %vm872, %v873, %v871
        %v875 = vrsqrt.pop %v855
        %v876 = vmul.f32 %v855, %v875
        %vm877 = vcmp.eq.f32.partialorder %v855, inf
        %v878 = vsel %vm877, %v855, %v876
        %vm879 = vcmp.eq.f32.partialorder %v855, 0.0
        %v880 = vand.u32 %v855, 2147483648
        %v881 = vsel %vm879, %v880, %v878
        %v882 = vrsqrt.pop %v856
        %v883 = vmul.f32 %v856, %v882
        %vm884 = vcmp.eq.f32.partialorder %v856, inf
        %v885 = vsel %vm884, %v856, %v883
        %vm886 = vcmp.eq.f32.partialorder %v856, 0.0
        %v887 = vand.u32 %v856, 2147483648
        %v888 = vsel %vm886, %v887, %v885
        %v889 = vrsqrt.pop %v857
        %v890 = vmul.f32 %v857, %v889
        %vm891 = vcmp.eq.f32.partialorder %v857, inf
        %v892 = vsel %vm891, %v857, %v890
        %vm893 = vcmp.eq.f32.partialorder %v857, 0.0
        %v894 = vand.u32 %v857, 2147483648
        %v895 = vsel %vm893, %v894, %v892
        %v896 = vrsqrt.pop %v858
        %v897 = vmul.f32 %v858, %v896
        %vm898 = vcmp.eq.f32.partialorder %v858, inf
        %v899 = vsel %vm898, %v858, %v897
        %vm900 = vcmp.eq.f32.partialorder %v858, 0.0
        %v901 = vand.u32 %v858, 2147483648
        %v902 = vsel %vm900, %v901, %v899
        %v903 = vrsqrt.pop %v859
        %v904 = vmul.f32 %v859, %v903
        %vm905 = vcmp.eq.f32.partialorder %v859, inf
        %v906 = vsel %vm905, %v859, %v904
        %vm907 = vcmp.eq.f32.partialorder %v859, 0.0
        %v908 = vand.u32 %v859, 2147483648
        %v909 = vsel %vm907, %v908, %v906
        %v910 = vrsqrt.pop %v860
        %v911 = vmul.f32 %v860, %v910
        %vm912 = vcmp.eq.f32.partialorder %v860, inf
        %v913 = vsel %vm912, %v860, %v911
        %vm914 = vcmp.eq.f32.partialorder %v860, 0.0
        %v915 = vand.u32 %v860, 2147483648
        %v916 = vsel %vm914, %v915, %v913
        %v917 = vstv %s261
        %v918 = vmul.f32 %v867, %v917
        %v919 = vmul.f32 %v874, %v917
        %v920 = vmul.f32 %v881, %v917
        %v921 = vmul.f32 %v888, %v917
        %v922 = vmul.f32 %v895, %v917
        %v923 = vmul.f32 %v902, %v917
        %v924 = vmul.f32 %v909, %v917
        %v925 = vmul.f32 %v916, %v917
        %v926 = vsub.f32 0.0, %v918
        %v927 = vsub.f32 0.0, %v919
        %v928 = vsub.f32 0.0, %v920
        %v929 = vsub.f32 0.0, %v921
        %v930 = vsub.f32 0.0, %v922
        %v931 = vsub.f32 0.0, %v923
        %v932 = vsub.f32 0.0, %v924
        %v933 = vsub.f32 0.0, %v925
        %v934 = vmul.f32 %v926, 1.442695
        %v935 = vpow.pop %v934
        %v936 = vmul.f32 %v927, 1.442695
        %v937 = vpow.pop %v936
        %v938 = vmul.f32 %v928, 1.442695
        %v939 = vpow.pop %v938
        %v940 = vmul.f32 %v929, 1.442695
        %v941 = vpow.pop %v940
        %v942 = vmul.f32 %v930, 1.442695
        %v943 = vpow.pop %v942
        %v944 = vmul.f32 %v931, 1.442695
        %v945 = vpow.pop %v944
        %v946 = vmul.f32 %v932, 1.442695
        %v947 = vpow.pop %v946
        %v948 = vmul.f32 %v933, 1.442695
        %v949 = vpow.pop %v948
        %v950 = vstv %s260
        %v951 = vmul.f32 %v867, %v950
        %v952 = vmul.f32 %v874, %v950
        %v953 = vmul.f32 %v881, %v950
        %v954 = vmul.f32 %v888, %v950
        %v955 = vmul.f32 %v895, %v950
        %v956 = vmul.f32 %v902, %v950
        %v957 = vmul.f32 %v909, %v950
        %v958 = vmul.f32 %v916, %v950
        %v959 = vsub.f32 2.0, %v951
        %v960 = vsub.f32 2.0, %v952
        %v961 = vsub.f32 2.0, %v953
        %v962 = vsub.f32 2.0, %v954
        %v963 = vsub.f32 2.0, %v955
        %v964 = vsub.f32 2.0, %v956
        %v965 = vsub.f32 2.0, %v957
        %v966 = vsub.f32 2.0, %v958
        %v967 = vmul.f32 %v959, %v935
        %v968 = vmul.f32 %v960, %v937
        %v969 = vmul.f32 %v961, %v939
        %v970 = vmul.f32 %v962, %v941
        %v971 = vmul.f32 %v963, %v943
        %v972 = vmul.f32 %v964, %v945
        %v973 = vmul.f32 %v965, %v947
        %v974 = vmul.f32 %v966, %v949
        %v975 = vmul.f32 %v967, %v967
        %v976 = vmul.f32 %v968, %v968
        %v977 = vmul.f32 %v969, %v969
        %v978 = vmul.f32 %v970, %v970
        %v979 = vmul.f32 %v971, %v971
        %v980 = vmul.f32 %v972, %v972
        %v981 = vmul.f32 %v973, %v973
        %v982 = vmul.f32 %v974, %v974
        %v983 = vadd.f32 %v975, %v976
        %v984 = vadd.f32 %v983, %v977
        %v985 = vadd.f32 %v984, %v978
        %v986 = vadd.f32 %v985, %v979
        %v987 = vadd.f32 %v986, %v980
        %v988 = vadd.f32 %v987, %v981
        %v989 = vadd.f32 %v988, %v982
        %v990 = vrot.slane %v989, 4
        %v991 = vadd.f32 %v989, %v990
        %v992 = vrot.slane %v991, 2
        %v993 = vadd.f32 %v991, %v992
        %v994 = vrot.slane %v993, 1
        %v995 = vadd.f32 %v993, %v994
        %v996 = vmax.f32 %v995, 1e-24
        %v997 = vrsqrt.pop %v996
        %v998 = vmul.f32 %v967, %v997
        %v999 = vmul.f32 %v968, %v997
        %v1000 = vmul.f32 %v969, %v997
        %v1001 = vmul.f32 %v970, %v997
        %v1002 = vmul.f32 %v971, %v997
        %v1003 = vmul.f32 %v972, %v997
        %v1004 = vmul.f32 %v973, %v997
        %v1005 = vmul.f32 %v974, %v997
        %v1006 = vmul.f32 %v935, %v950
        %v1007 = vmul.f32 %v937, %v950
        %v1008 = vmul.f32 %v939, %v950
        %v1009 = vmul.f32 %v941, %v950
        %v1010 = vmul.f32 %v943, %v950
        %v1011 = vmul.f32 %v945, %v950
        %v1012 = vmul.f32 %v947, %v950
        %v1013 = vmul.f32 %v949, %v950
        %v1014 = vmul.f32 %v789, %v1006
        %v1015 = vmul.f32 %v790, %v1007
        %v1016 = vmul.f32 %v791, %v1008
        %v1017 = vmul.f32 %v792, %v1009
        %v1018 = vmul.f32 %v793, %v1010
        %v1019 = vmul.f32 %v794, %v1011
        %v1020 = vmul.f32 %v795, %v1012
        %v1021 = vmul.f32 %v796, %v1013
        %v1022 = vmul.f32 %v1014, %v1014
        %v1023 = vmul.f32 %v1015, %v1015
        %v1024 = vmul.f32 %v1016, %v1016
        %v1025 = vmul.f32 %v1017, %v1017
        %v1026 = vmul.f32 %v1018, %v1018
        %v1027 = vmul.f32 %v1019, %v1019
        %v1028 = vmul.f32 %v1020, %v1020
        %v1029 = vmul.f32 %v1021, %v1021
        %v1030 = vadd.f32 %v1022, %v1023
        %v1031 = vadd.f32 %v1030, %v1024
        %v1032 = vadd.f32 %v1031, %v1025
        %v1033 = vadd.f32 %v1032, %v1026
        %v1034 = vadd.f32 %v1033, %v1027
        %v1035 = vadd.f32 %v1034, %v1028
        %v1036 = vadd.f32 %v1035, %v1029
        %v1037 = vrot.slane %v1036, 4
        %v1038 = vadd.f32 %v1036, %v1037
        %v1039 = vrot.slane %v1038, 2
        %v1040 = vadd.f32 %v1038, %v1039
        %v1041 = vrot.slane %v1040, 1
        %v1042 = vadd.f32 %v1040, %v1041
        %v1043 = vmax.f32 %v1042, 1e-24
        %v1044 = vrsqrt.pop %v1043
        %v1045 = vmul.f32 %v1014, %v1044
        %v1046 = vmul.f32 %v1015, %v1044
        %v1047 = vmul.f32 %v1016, %v1044
        %v1048 = vmul.f32 %v1017, %v1044
        %v1049 = vmul.f32 %v1018, %v1044
        %v1050 = vmul.f32 %v1019, %v1044
        %v1051 = vmul.f32 %v1020, %v1044
        %v1052 = vmul.f32 %v1021, %v1044
        %v1053 = vmul.f32 %v801, %v1006
        %v1054 = vmul.f32 %v802, %v1007
        %v1055 = vmul.f32 %v803, %v1008
        %v1056 = vmul.f32 %v804, %v1009
        %v1057 = vmul.f32 %v805, %v1010
        %v1058 = vmul.f32 %v806, %v1011
        %v1059 = vmul.f32 %v807, %v1012
        %v1060 = vmul.f32 %v808, %v1013
        %v1061 = vmul.f32 %v1053, %v1053
        %v1062 = vmul.f32 %v1054, %v1054
        %v1063 = vmul.f32 %v1055, %v1055
        %v1064 = vmul.f32 %v1056, %v1056
        %v1065 = vmul.f32 %v1057, %v1057
        %v1066 = vmul.f32 %v1058, %v1058
        %v1067 = vmul.f32 %v1059, %v1059
        %v1068 = vmul.f32 %v1060, %v1060
        %v1069 = vadd.f32 %v1061, %v1062
        %v1070 = vadd.f32 %v1069, %v1063
        %v1071 = vadd.f32 %v1070, %v1064
        %v1072 = vadd.f32 %v1071, %v1065
        %v1073 = vadd.f32 %v1072, %v1066
        %v1074 = vadd.f32 %v1073, %v1067
        %v1075 = vadd.f32 %v1074, %v1068
        %v1076 = vrot.slane %v1075, 4
        %v1077 = vadd.f32 %v1075, %v1076
        %v1078 = vrot.slane %v1077, 2
        %v1079 = vadd.f32 %v1077, %v1078
        %v1080 = vrot.slane %v1079, 1
        %v1081 = vadd.f32 %v1079, %v1080
        %v1082 = vmax.f32 %v1081, 1e-24
        %v1083 = vrsqrt.pop %v1082
        %v1084 = vmul.f32 %v1053, %v1083
        %v1085 = vmul.f32 %v1054, %v1083
        %v1086 = vmul.f32 %v1055, %v1083
        %v1087 = vmul.f32 %v1056, %v1083
        %v1088 = vmul.f32 %v1057, %v1083
        %v1089 = vmul.f32 %v1058, %v1083
        %v1090 = vmul.f32 %v1059, %v1083
        %v1091 = vmul.f32 %v1060, %v1083
        %v1092 = vmul.f32 %v813, %v1006
        %v1093 = vmul.f32 %v814, %v1007
        %v1094 = vmul.f32 %v815, %v1008
        %v1095 = vmul.f32 %v816, %v1009
        %v1096 = vmul.f32 %v817, %v1010
        %v1097 = vmul.f32 %v818, %v1011
        %v1098 = vmul.f32 %v819, %v1012
        %v1099 = vmul.f32 %v820, %v1013
        %v1100 = vmul.f32 %v1092, %v1092
        %v1101 = vmul.f32 %v1093, %v1093
        %v1102 = vmul.f32 %v1094, %v1094
        %v1103 = vmul.f32 %v1095, %v1095
        %v1104 = vmul.f32 %v1096, %v1096
        %v1105 = vmul.f32 %v1097, %v1097
        %v1106 = vmul.f32 %v1098, %v1098
        %v1107 = vmul.f32 %v1099, %v1099
        %v1108 = vadd.f32 %v1100, %v1101
        %v1109 = vadd.f32 %v1108, %v1102
        %v1110 = vadd.f32 %v1109, %v1103
        %v1111 = vadd.f32 %v1110, %v1104
        %v1112 = vadd.f32 %v1111, %v1105
        %v1113 = vadd.f32 %v1112, %v1106
        %v1114 = vadd.f32 %v1113, %v1107
        %v1115 = vrot.slane %v1114, 4
        %v1116 = vadd.f32 %v1114, %v1115
        %v1117 = vrot.slane %v1116, 2
        %v1118 = vadd.f32 %v1116, %v1117
        %v1119 = vrot.slane %v1118, 1
        %v1120 = vadd.f32 %v1118, %v1119
        %v1121 = vmax.f32 %v1120, 1e-24
        %v1122 = vrsqrt.pop %v1121
        %v1123 = vmul.f32 %v1092, %v1122
        %v1124 = vmul.f32 %v1093, %v1122
        %v1125 = vmul.f32 %v1094, %v1122
        %v1126 = vmul.f32 %v1095, %v1122
        %v1127 = vmul.f32 %v1096, %v1122
        %v1128 = vmul.f32 %v1097, %v1122
        %v1129 = vmul.f32 %v1098, %v1122
        %v1130 = vmul.f32 %v1099, %v1122
        %v1131 = vadd.f32 %v998, %v1045
        %v1132 = vadd.f32 %v999, %v1046
        %v1133 = vadd.f32 %v1000, %v1047
        %v1134 = vadd.f32 %v1001, %v1048
        %v1135 = vadd.f32 %v1002, %v1049
        %v1136 = vadd.f32 %v1003, %v1050
        %v1137 = vadd.f32 %v1004, %v1051
        %v1138 = vadd.f32 %v1005, %v1052
        %v1139 = vsub.f32 %v1131, %v1084
        %v1140 = vsub.f32 %v1132, %v1085
        %v1141 = vsub.f32 %v1133, %v1086
        %v1142 = vsub.f32 %v1134, %v1087
        %v1143 = vsub.f32 %v1135, %v1088
        %v1144 = vsub.f32 %v1136, %v1089
        %v1145 = vsub.f32 %v1137, %v1090
        %v1146 = vsub.f32 %v1138, %v1091
        %v1147 = vsub.f32 %v1139, %v1123
        %v1148 = vsub.f32 %v1140, %v1124
        %v1149 = vsub.f32 %v1141, %v1125
        %v1150 = vsub.f32 %v1142, %v1126
        %v1151 = vsub.f32 %v1143, %v1127
        %v1152 = vsub.f32 %v1144, %v1128
        %v1153 = vsub.f32 %v1145, %v1129
        %v1154 = vsub.f32 %v1146, %v1130
        %v1155 = vmul.f32 %v1147, 0.5
        %v1156 = vmul.f32 %v1148, 0.5
        %v1157 = vmul.f32 %v1149, 0.5
        %v1158 = vmul.f32 %v1150, 0.5
        %v1159 = vmul.f32 %v1151, 0.5
        %v1160 = vmul.f32 %v1152, 0.5
        %v1161 = vmul.f32 %v1153, 0.5
        %v1162 = vmul.f32 %v1154, 0.5
        %v1163 = vld [vmem:[%s3] sm:$0xff]
        %v1164 = vld [vmem:[%s3 + $0x8] sm:$0xff]
        %v1165 = vld [vmem:[%s3 + $0x10] sm:$0xf]
        %1167 = vset.pattern.permute.xlu0 0
        %1168 = vperm.xlu0 %1167, %v767
        %v1169 = vpop.permute.xlu0 %1168
        %1172 = vset.pattern.permute.xlu0 0
        %1173 = vperm.xlu0 %1172, %v768
        %v1174 = vpop.permute.xlu0 %1173
        %1177 = vset.pattern.permute.xlu0 0
        %1178 = vperm.xlu0 %1177, %v769
        %v1179 = vpop.permute.xlu0 %1178
        %vm1181 = vcmask 523264
        %v1183 = vsel %vm1181, %v1163, 0
        %v1186 = vsel %vm1181, %v1164, 0
        %v1189 = vsel %vm1181, %v1165, 0
        %1191 = vmatprep.subr.mxu0 0.0
        %1192 = vmatpush1.msra.mxu0 %v1155
        %1193 = vmatprep.subr.mxu0 0.0
        %1194 = vmatpush1.msra.mxu0 %v1156
        %1195 = vmatprep.subr.mxu0 0.0
        %1196 = vmatpush1.msra.mxu0 %v1157
        %1197 = vmatprep.subr.mxu0 0.0
        %1198 = vmatpush1.msra.mxu0 %v1158
        %1199 = vmatprep.subr.mxu0 0.0
        %1200 = vmatpush1.msra.mxu0 %v1159
        %1201 = vmatprep.subr.mxu0 0.0
        %1202 = vmatpush1.msra.mxu0 %v1160
        %1203 = vmatprep.subr.mxu0 0.0
        %1204 = vmatpush1.msra.mxu0 %v1161
        %1205 = vmatprep.subr.mxu0 0.0
        %1206 = vmatpush1.msra.mxu0 %v1162
        %1207 = vmatprep.subr.mxu0 0.0
        %1208 = vmatpush1.msra.mxu0 0.0
        %1209 = vmatprep.subr.mxu0 0.0
        %1210 = vmatpush1.msra.mxu0 0.0
        %1211 = vmatprep.subr.mxu0 0.0
        %1212 = vmatpush1.msra.mxu0 0.0
        %1213 = vmatprep.subr.mxu0 0.0
        %1214 = vmatpush1.msra.mxu0 0.0
        %1215 = vmatprep.subr.mxu0 0.0
        %1216 = vmatpush1.msra.mxu0 0.0
        %1217 = vmatprep.subr.mxu0 0.0
        %1218 = vmatpush1.msra.mxu0 0.0
        %1219 = vmatprep.subr.mxu0 0.0
        %1220 = vmatpush1.msra.mxu0 0.0
        %1221 = vmatprep.subr.mxu0 0.0
        %1222 = vmatpush1.msra.mxu0 0.0
        %1223 = vmatprep.subr.mxu0 0.0
        %1224 = vmatpush1.msra.mxu0 0.0
        %1225 = vmatprep.subr.mxu0 0.0
        %1226 = vmatpush1.msra.mxu0 0.0
        %1227 = vmatprep.subr.mxu0 0.0
        %1228 = vmatpush1.msra.mxu0 0.0
        %1229 = vmatprep.subr.mxu0 0.0
        %1230 = vmatpush1.msra.mxu0 0.0
        %1231 = vmatprep.subr.mxu0 0.0
        %1232 = vmatpush1.msra.mxu0 0.0
        %1233 = vmatprep.subr.mxu0 0.0
        %1234 = vmatpush1.msra.mxu0 0.0
        %1235 = vmatprep.subr.mxu0 0.0
        %1236 = vmatpush1.msra.mxu0 0.0
        %1237 = vmatprep.subr.mxu0 0.0
        %1238 = vmatpush1.msra.mxu0 0.0
        %1239 = vmatprep.subr.mxu0 0.0
        %1240 = vmatpush1.msra.mxu0 0.0
        %1241 = vmatprep.subr.mxu0 0.0
        %1242 = vmatpush1.msra.mxu0 0.0
        %1243 = vmatprep.subr.mxu0 0.0
        %1244 = vmatpush1.msra.mxu0 0.0
        %1245 = vmatprep.subr.mxu0 0.0
        %1246 = vmatpush1.msra.mxu0 0.0
        %1247 = vmatprep.subr.mxu0 0.0
        %1248 = vmatpush1.msra.mxu0 0.0
        %1249 = vmatprep.subr.mxu0 0.0
        %1250 = vmatpush1.msra.mxu0 0.0
        %1251 = vmatprep.subr.mxu0 0.0
        %1252 = vmatpush1.msra.mxu0 0.0
        %1253 = vmatprep.subr.mxu0 0.0
        %1254 = vmatpush1.msra.mxu0 0.0
        %1255 = vmatprep.mubr.f32.mxu0 0.0
        %1256 = vmatmul.mubr.f32.gmra.mrb[0].mxu0 %v1183
        %v1257 = vpop.f32.mrb[0].mxu0
        %v1258 = vadd.f32 %v1169, %v1257
        %v1259 = vpop.f32.mrb[0].mxu0
        %1260 = vmatprep.mubr.f32.mxu0 0.0
        %1261 = vmatmul.mubr.f32.gmra.mrb[0].mxu0 %v1186
        %v1262 = vpop.f32.mrb[0].mxu0
        %v1263 = vadd.f32 %v1174, %v1262
        %v1264 = vpop.f32.mrb[0].mxu0
        %1265 = vmatprep.mubr.f32.mxu0 0.0
        %1266 = vmatmul.mubr.f32.gmra.mrb[0].mxu0 %v1189
        %v1267 = vpop.f32.mrb[0].mxu0
        %v1268 = vadd.f32 %v1179, %v1267
        %v1269 = vpop.f32.mrb[0].mxu0
        %1270 = vdwg.mxu0
        %v1271 = vmax.f32 %v1258, 0.0
        %v1272 = vmax.f32 %v1263, 0.0
        %v1273 = vmax.f32 %v1268, 0.0
        %v1274 = vld [vmem:[%s5] sm:$0xff]
        %v1275 = vld [vmem:[%s5 + $0x8] sm:$0xff]
        %v1276 = vld [vmem:[%s5 + $0x10] sm:$0xf]
        %1278 = vset.pattern.permute.xlu0 0
        %1279 = vperm.xlu0 %1278, %v1274
        %v1280 = vpop.permute.xlu0 %1279
        %1283 = vset.pattern.permute.xlu0 0
        %1284 = vperm.xlu0 %1283, %v1275
        %v1285 = vpop.permute.xlu0 %1284
        %1288 = vset.pattern.permute.xlu0 0
        %1289 = vperm.xlu0 %1288, %v1276
        %v1290 = vpop.permute.xlu0 %1289
        %v1292 = vmul.f32 %v1271, %v1280
        %v1293 = vmul.f32 %v1272, %v1285
        %v1294 = vmul.f32 %v1273, %v1290
        %v1295 = vadd.f32 %v1292, %v1293
        %vm1296 = vcmask 1043456
        %v1297 = vsel %vm1296, %v1294, 0.0
        %v1298 = vadd.f32 %v1295, %v1297
        %v1299 = vrot.slane %v1298, 4
        %v1300 = vadd.f32 %v1298, %v1299
        %v1301 = vrot.slane %v1300, 2
        %v1302 = vadd.f32 %v1300, %v1301
        %v1303 = vrot.slane %v1302, 1
        %v1304 = vadd.f32 %v1302, %v1303
        %v1305 = vstv %s262
        %v1306 = vadd.f32 %v1304, %v1305
        %1307 = vst [vmem:[%s255] sm:$0x1] %v1306
        %s1308 = sand.u32 %s160, 1
        %s1309 = scalar_lea.sflag [#allocation3], %s1308
        %s1310 = sand.u32 %s160, 1
        %s1311 = scalar_lea.vmem [#allocation5], %s1310
        // Predicated region
        $region49: #{tpu_custom_call.1} parent=43 // pred_check
          %p1312 = pneg %p170
        $region50: #{tpu_custom_call.1} parent=43 // pred_check_branch
          %1314 = sbr.rel (%p1312) target = $region52
        $region51: #{tpu_custom_call.1} parent=43 // pred_region
          %s1316 = ssub.s32 16, 16
          %1317 = vsyncadd %s1309, %s1316
          %s1318 = smul.addr %s21, 16
          %s1319 = scalar_lea.hbm %s6, %s1318
          %s1321 = sshll.u32 %s1311, 4
          %s1322 = int_to_ptr.vmem [resolvable:$true] %s1321
          %1324 = dma.vmem_to_hbm [thread:$0]  %s1322, 16, %s1319, %s1309
        $region52: #{tpu_custom_call.1} parent=43 // pred_fallthru
          _
      $region44: #{tpu_custom_call.1} parent=5 // pred_fallthru
        _
      %p1325 = scmp.le.s32.totalorder 2, %s16
      // Predicated region
      $region53: #{tpu_custom_call.1} parent=5 // pred_check
        %p1326 = pneg %p1325
      $region54: #{tpu_custom_call.1} parent=5 // pred_check_branch
        %1328 = sbr.rel (%p1326) target = $region56
      $region55: #{tpu_custom_call.1} parent=5 // pred_region
        %s1329 = ssub.s32 %s16, 2
        // Predicated region
        $region57: #{tpu_custom_call.1} parent=55 // pred_check
          %p1330 = pneg %p176
        $region58: #{tpu_custom_call.1} parent=55 // pred_check_branch
          %1332 = sbr.rel (%p1330) target = $region60
        $region59: #{tpu_custom_call.1} parent=55 // pred_region
          %s1333 = sand.u32 %s161, 1
          %s1334 = scalar_lea.sflag [#allocation3], %s1333
          %s1335 = sand.u32 %s161, 1
          %s1336 = scalar_lea.vmem [#allocation5], %s1335
          %1337 = dma.done %s1334, 16
        $region60: #{tpu_custom_call.1} parent=55 // pred_fallthru
          _
      $region56: #{tpu_custom_call.1} parent=5 // pred_fallthru
        _
    $region6: #{tpu_custom_call.1} parent=1 // loop_footer
      %s20 = sadd.s32 1, %s16
    $region7: #{tpu_custom_call.1} parent=1 // loop_footer_branch
      %15 = sbr.rel target = $region3
    $region8: #{tpu_custom_call.1} parent=1 // loop_exit
      _
    %1338 = vsyncpa [#allocation3], 1
    %s1339 = scalar_lea.sflag [#allocation3], 1
    %1340 = vsyncpa %s1339, 1
    %1341 = vsyncpa [#allocation4], 1
    %s1342 = scalar_lea.sflag [#allocation4], 1
    %1343 = vsyncpa %s1342, 1

</llo_original>
